<compile_context>
chip_gen: v6e
topology: v6e:2x2x1
jax: 0.10.0
libtpu: 0.0.40
codegen_flags: <defaults>
</compile_context>

<pallas_src>
import functools
import math

import jax
import jax.numpy as jnp
from jax import lax
from jax.experimental import pallas as pl
from jax.experimental.pallas import tpu as pltpu

EPS_IN = 1e-3   # InstanceNorm2d eps used by the module
EPS_BN = 1e-5   # BatchNorm2d default eps


# --------------------------------- kernel ------------------------------------
def _oafilter_kernel(
    n_valid,
    x_ref,        # (1, R, Np)  f32   R = Bt * Cp
    w1_ref,       # (R, R)      bf16  conv1 weight (block-diag over Bt)
    w2t_ref,      # (Np, Np)    bf16  conv2 (point-dim) weight, pre-transposed
    w3_ref,       # (R, R)      bf16  conv3 weight (block-diag over Bt)
    colp_ref,     # (R, 6)      f32   [b1 | s1 | t1 | s3 | t3 | b3]
    rowp_ref,     # (3, Np)     f32   [s2 ; t2 ; b2]
    out_ref,      # (1, R, Np)  f32
):
    f32 = jnp.float32
    bf16 = jnp.bfloat16
    np_pad = x_ref.shape[2]
    inv_n = 1.0 / float(n_valid)

    # unpack packed params (static slices; cheap)
    b1 = colp_ref[:, 0:1]
    s1 = colp_ref[:, 1:2]
    t1 = colp_ref[:, 2:3]
    s3 = colp_ref[:, 3:4]
    t3 = colp_ref[:, 4:5]
    b3 = colp_ref[:, 5:6]
    s2 = rowp_ref[0:1, :]
    t2 = rowp_ref[1:2, :]
    b2 = rowp_ref[2:3, :]

    x = x_ref[0]                                          # (R, Np)

    # ---- conv1: InstanceNorm(C) -> BN(C) -> ReLU -> 1x1 Conv(C -> Co) ------
    # one-pass stats; padded point columns of x are zero so sum * 1/N is exact
    mu = jnp.sum(x, axis=1, keepdims=True) * inv_n
    ex2 = jnp.sum(x * x, axis=1, keepdims=True) * inv_n
    var = jnp.maximum(ex2 - mu * mu, 0.0)
    xn = (x - mu) * lax.rsqrt(var + EPS_IN)
    a = jnp.maximum(xn * s1 + t1, 0.0).astype(bf16)
    A = jnp.dot(w1_ref[...], a, preferred_element_type=f32) + b1   # (R, Np)

    if np_pad != n_valid:
        # zero padded point columns so conv3's InstanceNorm stats stay exact
        col = lax.broadcasted_iota(jnp.int32, (1, np_pad), 1)
        A = jnp.where(col < n_valid, A, 0.0)

    # ---- conv2 (point-dim view): BN(points) -> ReLU -> Conv(points->points),
    # residual.  Bt batches stacked on sublanes feed one large matmul.
    h = jnp.maximum(A * s2 + t2, 0.0).astype(bf16)
    d = jnp.dot(h, w2t_ref[...], preferred_element_type=f32) + b2
    o1 = A + d

    # ---- conv3: InstanceNorm(Co) -> BN(Co) -> ReLU -> 1x1 Conv(Co -> Co) ---
    mu2 = jnp.sum(o1, axis=1, keepdims=True) * inv_n
    ex22 = jnp.sum(o1 * o1, axis=1, keepdims=True) * inv_n
    # TODO(synk): one-pass variance can cancel for large means; clamped here.
    var2 = jnp.maximum(ex22 - mu2 * mu2, 0.0)
    on = (o1 - mu2) * lax.rsqrt(var2 + EPS_IN)
    ob = jnp.maximum(on * s3 + t3, 0.0).astype(bf16)
    e = jnp.dot(w3_ref[...], ob, preferred_element_type=f32) + b3

    # shot_cut is None: residual with the input, re-read from the (still
    # resident, unmodified) input buffer.
    out_ref[0] = e + x_ref[0]


# ------------------------------- helpers --------------------------------------
def _round_up(v, m):
    return (v + m - 1) // m * m


def _pick_bt(B):
    """Batches per grid step: prefer >= 4 grid steps (pipelining / megacore),
    never collapse to a single-step grid for B >= 2, cap Bt at 4."""
    for bt in (4, 2):
        if B % bt == 0 and B // bt >= 4:
            return bt
    if B % 2 == 0 and B // 2 >= 2:
        return 2
    return 1


def _block_diag(w, bt):
    if bt == 1:
        return w
    r = w.shape[0]
    out = jnp.zeros((bt * r, bt * r), w.dtype)
    for b in range(bt):
        out = out.at[b * r:(b + 1) * r, b * r:(b + 1) * r].set(w)
    return out


def _vmem_limit_bytes():
    """v5e/v6e have 128 MiB VMEM (allow larger live tiles); v7x only 64 MiB."""
    try:
        kind = jax.devices()[0].device_kind.lower()
    except Exception:
        kind = ""
    return (96 if ("v5" in kind or "v6" in kind) else 48) * 1024 * 1024


def _const_spec(arr, single_buffer):
    """Grid-invariant operand: full-array block, index map pinned to block 0.
    With single_buffer=True it is single-buffered (its index_map never changes,
    so default double-buffering only wastes VMEM)."""
    nd = arr.ndim
    if single_buffer:
        return pl.BlockSpec(arr.shape, lambda g: (0,) * nd,
                            pipeline_mode=pl.Buffered(1))
    return pl.BlockSpec(arr.shape, lambda g: (0,) * nd)


# ------------------------------- wrapper --------------------------------------
def oafilter_forward(x, params):
    """x: (B, C, N, 1) float32 NCHW; returns the same shape (float32)."""
    B, C, N, W = x.shape
    assert W == 1, "OANet layout expects W == 1"
    (w1, b1, g1, be1, g2, be2, w2, b2, g3, be3, w3, b3) = params
    Co = w1.shape[0]
    assert Co == C, "kernel implements shot_cut=None (out_channels == channels)"
    assert w2.shape == (N, N), "conv2 acts on the point dimension"

    Bt = _pick_bt(B)
    G = B // Bt
    Cp = _round_up(C, 16)          # channels on sublanes (16: bf16 packing)
    Np = _round_up(N, 128)         # points on lanes (lane-dense stores)
    R = Bt * Cp

    bn_scale = 1.0 / math.sqrt(1.0 + EPS_BN)
    bf16 = jnp.bfloat16

    def padv(v, n):
        return jnp.pad(v, (0, n - v.shape[0]))

    def padm(m, r, c):
        return jnp.pad(m, ((0, r - m.shape[0]), (0, c - m.shape[1])))

    def tile_col(v):               # per-channel params, repeated per Bt batch
        return jnp.tile(padv(v, Cp).reshape(Cp, 1), (Bt, 1))

    # input: (B, C, N, 1) -> (B, Cp, Np) zero-padded -> (G, Bt*Cp, Np) (free)
    xp = jnp.pad(x[..., 0], ((0, 0), (0, Cp - C), (0, Np - N)))
    xp = xp.reshape(G, R, Np)

    # channel-conv weights: block-diagonal over the Bt batches stacked on the
    # sublane axis -> a single (R,R)@(R,Np) matmul each, no concat copies.
    w1bd = _block_diag(padm(w1, Cp, Cp), Bt).astype(bf16)
    w3bd = _block_diag(padm(w3, Cp, Cp), Bt).astype(bf16)
    # point conv pre-transposed so the kernel right-multiplies: act @ W2^T
    w2tp = padm(w2, Np, Np).T.astype(bf16)

    # packed per-channel column params [b1 | s1 | t1 | s3 | t3 | b3]
    colp = jnp.concatenate(
        [tile_col(b1), tile_col(g1 * bn_scale), tile_col(be1),
         tile_col(g3 * bn_scale), tile_col(be3), tile_col(b3)], axis=1)
    # packed per-point row params [s2 ; t2 ; b2]
    rowp = jnp.stack(
        [padv(g2 * bn_scale, Np), padv(be2, Np), padv(b2, Np)], axis=0)

    const_args = (w1bd, w2tp, w3bd, colp, rowp)
    kernel = functools.partial(_oafilter_kernel, N)

    flops = G * (4 * R * R * Np + 2 * R * Np * Np)
    bytes_accessed = (int(xp.nbytes) + sum(int(a.nbytes) for a in const_args)
                      + G * R * Np * 4)
    cost = pl.CostEstimate(flops=int(flops), transcendentals=int(2 * G * R),
                           bytes_accessed=int(bytes_accessed))

    def run(single_buffer):
        in_specs = [pl.BlockSpec((1, R, Np), lambda g: (g, 0, 0))]
        in_specs += [_const_spec(a, single_buffer) for a in const_args]
        return pl.pallas_call(
            kernel,
            out_shape=jax.ShapeDtypeStruct((G, R, Np), jnp.float32),
            grid=(G,),
            in_specs=in_specs,
            out_specs=pl.BlockSpec((1, R, Np), lambda g: (g, 0, 0)),
            compiler_params=pltpu.CompilerParams(
                dimension_semantics=("parallel",),
                vmem_limit_bytes=_vmem_limit_bytes()),
            cost_estimate=cost,
        )(xp, *const_args)

    try:
        out = run(True)            # single-buffer grid-invariant operands
    except Exception:              # pipeline_mode unsupported -> default specs
        out = run(False)

    out = out.reshape(B, Cp, Np)[:, :C, :N]
    return out[..., None]                                  # (B, C, N, 1)


# ---------------- pure-JAX reference (mirrors PyTorch NCHW semantics) ---------
def _inorm(t):
    mu = t.mean(axis=(2, 3), keepdims=True)
    var = ((t - mu) ** 2).mean(axis=(2, 3), keepdims=True)
    return (t - mu) / jnp.sqrt(var + EPS_IN)


def _bn(t, gamma, beta):
    s = gamma / jnp.sqrt(1.0 + EPS_BN)
    return t * s[None, :, None, None] + beta[None, :, None, None]


def _conv1x1(t, w, b):
    y = jnp.einsum('bchw,oc->bohw', t, w, precision=lax.Precision.HIGHEST)
    return y + b[None, :, None, None]


def oafilter_reference(x, params):
    (w1, b1, g1, be1, g2, be2, w2, b2, g3, be3, w3, b3) = params
    out = _conv1x1(jnp.maximum(_bn(_inorm(x), g1, be1), 0.0), w1, b1)
    out = jnp.transpose(out, (0, 2, 1, 3))                 # trans(1, 2)
    out = out + _conv1x1(jnp.maximum(_bn(out, g2, be2), 0.0), w2, b2)
    out = jnp.transpose(out, (0, 2, 1, 3))                 # trans(1, 2)
    out = _conv1x1(jnp.maximum(_bn(_inorm(out), g3, be3), 0.0), w3, b3)
    return out + x


# ------------------------------ parameter init --------------------------------
def init_params(key, channels, points, out_channels=None):
    if out_channels is None:
        out_channels = channels

    def conv_init(k, fan_out, fan_in):
        k1, k2 = jax.random.split(k)
        bound = 1.0 / math.sqrt(fan_in)
        w = jax.random.uniform(k1, (fan_out, fan_in), jnp.float32, -bound, bound)
        b = jax.random.uniform(k2, (fan_out,), jnp.float32, -bound, bound)
        return w, b

    def bn_init(k, n):
        # randomized (not PyTorch's 1/0 default) so the numerical check
        # actually exercises the packed scale/shift paths.
        k1, k2 = jax.random.split(k)
        g = jax.random.uniform(k1, (n,), jnp.float32, 0.5, 1.5)
        b = 0.1 * jax.random.normal(k2, (n,), jnp.float32)
        return g, b

    kc1, kc2, kc3, kb1, kb2, kb3 = jax.random.split(key, 6)
    w1, b1 = conv_init(kc1, out_channels, channels)        # conv1: C  -> Co
    w2, b2 = conv_init(kc2, points, points)                # conv2: N  -> N
    w3, b3 = conv_init(kc3, out_channels, out_channels)    # conv3: Co -> Co
    g1, be1 = bn_init(kb1, channels)
    g2, be2 = bn_init(kb2, points)
    g3, be3 = bn_init(kb3, out_channels)
    return (w1, b1, g1, be1, g2, be2, w2, b2, g3, be3, w3, b3)


if __name__ == "__main__":
    key = jax.random.PRNGKey(0)

    def check(kx, kp, B, C, N):
        x = jax.random.normal(kx, (B, C, N, 1), jnp.float32)
        params = init_params(kp, C, N, C)
        out = jax.block_until_ready(oafilter_forward(x, params))
        ref = jax.block_until_ready(oafilter_reference(x, params))
        assert out.shape == x.shape
        err = float(jnp.max(jnp.abs(out - ref)))
        scale = float(jnp.max(jnp.abs(ref)))
        # bf16 MXU operands with f32 accumulation -> loose-ish tolerance.
        assert err <= 5e-2 * scale + 1e-3, (B, C, N, err, scale)

    k1, k2, k3, k4 = jax.random.split(key, 4)
    check(k1, k2, B=2, C=8, N=16)      # Bt=1 path; padded channels + points
    check(k3, k4, B=4, C=32, N=200)    # Bt=2 block-diag path; lane-pad mask
    print("KERNEL_OK")
</pallas_src>

<mosaic_0001>
module attributes {stable_mosaic.version = 11 : i64} {
  func.func @_oafilter_kernel(%arg0: i32, %arg1: memref<1x16x128xf32, #tpu.memory_space<vmem>>, %arg2: memref<16x16xbf16, #tpu.memory_space<vmem>>, %arg3: memref<128x128xbf16, #tpu.memory_space<vmem>>, %arg4: memref<16x16xbf16, #tpu.memory_space<vmem>>, %arg5: memref<16x6xf32, #tpu.memory_space<vmem>>, %arg6: memref<3x128xf32, #tpu.memory_space<vmem>>, %arg7: memref<1x16x128xf32, #tpu.memory_space<vmem>>) attributes {dimension_semantics = [#tpu.dimension_semantics<parallel>], iteration_bounds = array<i64: 2>, scalar_prefetch = 0 : i64, scratch_operands = 0 : i64, tpu.core_type = #tpu.core_type<tc>, window_params = [{transform_indices = @transform_0, window_bounds = array<i64: 1, 16, 128>}, {pipeline_mode = #tpu.pipeline_mode<synchronous>, transform_indices = @transform_1, window_bounds = array<i64: 16, 16>}, {pipeline_mode = #tpu.pipeline_mode<synchronous>, transform_indices = @transform_2, window_bounds = array<i64: 128, 128>}, {pipeline_mode = #tpu.pipeline_mode<synchronous>, transform_indices = @transform_3, window_bounds = array<i64: 16, 16>}, {pipeline_mode = #tpu.pipeline_mode<synchronous>, transform_indices = @transform_4, window_bounds = array<i64: 16, 6>}, {pipeline_mode = #tpu.pipeline_mode<synchronous>, transform_indices = @transform_5, window_bounds = array<i64: 3, 128>}, {transform_indices = @transform_6, window_bounds = array<i64: 1, 16, 128>}]} {
    %c0 = arith.constant 0 : index
    %c0_0 = arith.constant 0 : index
    %0 = vector.load %arg5[%c0, %c0_0] : memref<16x6xf32, #tpu.memory_space<vmem>>, vector<16x1xf32>
    %c0_1 = arith.constant 0 : index
    %c1 = arith.constant 1 : index
    %1 = vector.load %arg5[%c0_1, %c1] : memref<16x6xf32, #tpu.memory_space<vmem>>, vector<16x1xf32>
    %c0_2 = arith.constant 0 : index
    %c2 = arith.constant 2 : index
    %2 = vector.load %arg5[%c0_2, %c2] : memref<16x6xf32, #tpu.memory_space<vmem>>, vector<16x1xf32>
    %c0_3 = arith.constant 0 : index
    %c3 = arith.constant 3 : index
    %3 = vector.load %arg5[%c0_3, %c3] : memref<16x6xf32, #tpu.memory_space<vmem>>, vector<16x1xf32>
    %c0_4 = arith.constant 0 : index
    %c4 = arith.constant 4 : index
    %4 = vector.load %arg5[%c0_4, %c4] : memref<16x6xf32, #tpu.memory_space<vmem>>, vector<16x1xf32>
    %c0_5 = arith.constant 0 : index
    %c5 = arith.constant 5 : index
    %5 = vector.load %arg5[%c0_5, %c5] : memref<16x6xf32, #tpu.memory_space<vmem>>, vector<16x1xf32>
    %c0_6 = arith.constant 0 : index
    %c0_7 = arith.constant 0 : index
    %6 = vector.load %arg6[%c0_6, %c0_7] : memref<3x128xf32, #tpu.memory_space<vmem>>, vector<1x128xf32>
    %c1_8 = arith.constant 1 : index
    %c0_9 = arith.constant 0 : index
    %7 = vector.load %arg6[%c1_8, %c0_9] : memref<3x128xf32, #tpu.memory_space<vmem>>, vector<1x128xf32>
    %c2_10 = arith.constant 2 : index
    %c0_11 = arith.constant 0 : index
    %8 = vector.load %arg6[%c2_10, %c0_11] : memref<3x128xf32, #tpu.memory_space<vmem>>, vector<1x128xf32>
    %c0_12 = arith.constant 0 : index
    %c0_13 = arith.constant 0 : index
    %c0_14 = arith.constant 0 : index
    %9 = vector.load %arg1[%c0_12, %c0_13, %c0_14] : memref<1x16x128xf32, #tpu.memory_space<vmem>>, vector<1x16x128xf32>
    %10 = vector.shape_cast %9 : vector<1x16x128xf32> to vector<16x128xf32>
    %cst = arith.constant dense<0.000000e+00> : vector<16xf32>
    %11 = vector.multi_reduction <add>, %10, %cst [1] : vector<16x128xf32> to vector<16xf32>
    %12 = vector.shape_cast %11 : vector<16xf32> to vector<16x1xf32>
    %cst_15 = arith.constant 6.250000e-02 : f32
    %13 = vector.broadcast %cst_15 : f32 to vector<16x1xf32>
    %14 = arith.mulf %12, %13 : vector<16x1xf32>
    %15 = arith.mulf %10, %10 : vector<16x128xf32>
    %cst_16 = arith.constant dense<0.000000e+00> : vector<16xf32>
    %16 = vector.multi_reduction <add>, %15, %cst_16 [1] : vector<16x128xf32> to vector<16xf32>
    %17 = vector.shape_cast %16 : vector<16xf32> to vector<16x1xf32>
    %cst_17 = arith.constant 6.250000e-02 : f32
    %18 = vector.broadcast %cst_17 : f32 to vector<16x1xf32>
    %19 = arith.mulf %17, %18 : vector<16x1xf32>
    %20 = arith.mulf %14, %14 : vector<16x1xf32>
    %21 = arith.subf %19, %20 : vector<16x1xf32>
    %cst_18 = arith.constant 0.000000e+00 : f32
    %22 = vector.broadcast %cst_18 : f32 to vector<16x1xf32>
    %23 = arith.maximumf %21, %22 : vector<16x1xf32>
    %24 = vector.broadcast %14 : vector<16x1xf32> to vector<16x128xf32>
    %25 = arith.subf %10, %24 : vector<16x128xf32>
    %cst_19 = arith.constant 1.000000e-03 : f32
    %26 = vector.broadcast %cst_19 : f32 to vector<16x1xf32>
    %27 = arith.addf %23, %26 : vector<16x1xf32>
    %28 = math.rsqrt %27 : vector<16x1xf32>
    %29 = vector.broadcast %28 : vector<16x1xf32> to vector<16x128xf32>
    %30 = arith.mulf %25, %29 : vector<16x128xf32>
    %31 = vector.broadcast %1 : vector<16x1xf32> to vector<16x128xf32>
    %32 = arith.mulf %30, %31 : vector<16x128xf32>
    %33 = vector.broadcast %2 : vector<16x1xf32> to vector<16x128xf32>
    %34 = arith.addf %32, %33 : vector<16x128xf32>
    %cst_20 = arith.constant 0.000000e+00 : f32
    %35 = vector.broadcast %cst_20 : f32 to vector<16x128xf32>
    %36 = arith.maximumf %34, %35 : vector<16x128xf32>
    %37 = arith.truncf %36 : vector<16x128xf32> to vector<16x128xbf16>
    %c0_21 = arith.constant 0 : index
    %c0_22 = arith.constant 0 : index
    %38 = vector.load %arg2[%c0_21, %c0_22] : memref<16x16xbf16, #tpu.memory_space<vmem>>, vector<16x16xbf16>
    %cst_23 = arith.constant dense<0.000000e+00> : vector<16x128xf32>
    %39 = tpu.matmul %38, %37, %cst_23 {dimension_numbers = #tpu.dot_dimension_numbers<[1], [0], [0], [1], [0, 0, 1, 1], [], []>} : vector<16x16xbf16>, vector<16x128xbf16>, vector<16x128xf32> -> vector<16x128xf32>
    %40 = vector.broadcast %0 : vector<16x1xf32> to vector<16x128xf32>
    %41 = arith.addf %39, %40 : vector<16x128xf32>
    %42 = tpu.iota {dimensions = array<i32: 1>} : vector<1x128xi32>
    %c16_i32 = arith.constant 16 : i32
    %43 = vector.broadcast %c16_i32 : i32 to vector<1x128xi32>
    %44 = arith.cmpi slt, %42, %43 : vector<1x128xi32>
    %cst_24 = arith.constant 0.000000e+00 : f32
    %45 = vector.shape_cast %44 : vector<1x128xi1> to vector<1x128xi1>
    %46 = vector.broadcast %45 : vector<1x128xi1> to vector<16x128xi1>
    %47 = vector.broadcast %cst_24 : f32 to vector<16x128xf32>
    %48 = arith.select %46, %41, %47 : vector<16x128xi1>, vector<16x128xf32>
    %49 = vector.broadcast %6 : vector<1x128xf32> to vector<16x128xf32>
    %50 = arith.mulf %48, %49 : vector<16x128xf32>
    %51 = vector.broadcast %7 : vector<1x128xf32> to vector<16x128xf32>
    %52 = arith.addf %50, %51 : vector<16x128xf32>
    %cst_25 = arith.constant 0.000000e+00 : f32
    %53 = vector.broadcast %cst_25 : f32 to vector<16x128xf32>
    %54 = arith.maximumf %52, %53 : vector<16x128xf32>
    %55 = arith.truncf %54 : vector<16x128xf32> to vector<16x128xbf16>
    %c0_26 = arith.constant 0 : index
    %c0_27 = arith.constant 0 : index
    %56 = vector.load %arg3[%c0_26, %c0_27] : memref<128x128xbf16, #tpu.memory_space<vmem>>, vector<128x128xbf16>
    %cst_28 = arith.constant dense<0.000000e+00> : vector<16x128xf32>
    %57 = tpu.matmul %55, %56, %cst_28 {dimension_numbers = #tpu.dot_dimension_numbers<[1], [0], [0], [1], [0, 0, 1, 1], [], []>} : vector<16x128xbf16>, vector<128x128xbf16>, vector<16x128xf32> -> vector<16x128xf32>
    %58 = vector.broadcast %8 : vector<1x128xf32> to vector<16x128xf32>
    %59 = arith.addf %57, %58 : vector<16x128xf32>
    %60 = arith.addf %48, %59 : vector<16x128xf32>
    %cst_29 = arith.constant dense<0.000000e+00> : vector<16xf32>
    %61 = vector.multi_reduction <add>, %60, %cst_29 [1] : vector<16x128xf32> to vector<16xf32>
    %62 = vector.shape_cast %61 : vector<16xf32> to vector<16x1xf32>
    %cst_30 = arith.constant 6.250000e-02 : f32
    %63 = vector.broadcast %cst_30 : f32 to vector<16x1xf32>
    %64 = arith.mulf %62, %63 : vector<16x1xf32>
    %65 = arith.mulf %60, %60 : vector<16x128xf32>
    %cst_31 = arith.constant dense<0.000000e+00> : vector<16xf32>
    %66 = vector.multi_reduction <add>, %65, %cst_31 [1] : vector<16x128xf32> to vector<16xf32>
    %67 = vector.shape_cast %66 : vector<16xf32> to vector<16x1xf32>
    %cst_32 = arith.constant 6.250000e-02 : f32
    %68 = vector.broadcast %cst_32 : f32 to vector<16x1xf32>
    %69 = arith.mulf %67, %68 : vector<16x1xf32>
    %70 = arith.mulf %64, %64 : vector<16x1xf32>
    %71 = arith.subf %69, %70 : vector<16x1xf32>
    %cst_33 = arith.constant 0.000000e+00 : f32
    %72 = vector.broadcast %cst_33 : f32 to vector<16x1xf32>
    %73 = arith.maximumf %71, %72 : vector<16x1xf32>
    %74 = vector.broadcast %64 : vector<16x1xf32> to vector<16x128xf32>
    %75 = arith.subf %60, %74 : vector<16x128xf32>
    %cst_34 = arith.constant 1.000000e-03 : f32
    %76 = vector.broadcast %cst_34 : f32 to vector<16x1xf32>
    %77 = arith.addf %73, %76 : vector<16x1xf32>
    %78 = math.rsqrt %77 : vector<16x1xf32>
    %79 = vector.broadcast %78 : vector<16x1xf32> to vector<16x128xf32>
    %80 = arith.mulf %75, %79 : vector<16x128xf32>
    %81 = vector.broadcast %3 : vector<16x1xf32> to vector<16x128xf32>
    %82 = arith.mulf %80, %81 : vector<16x128xf32>
    %83 = vector.broadcast %4 : vector<16x1xf32> to vector<16x128xf32>
    %84 = arith.addf %82, %83 : vector<16x128xf32>
    %cst_35 = arith.constant 0.000000e+00 : f32
    %85 = vector.broadcast %cst_35 : f32 to vector<16x128xf32>
    %86 = arith.maximumf %84, %85 : vector<16x128xf32>
    %87 = arith.truncf %86 : vector<16x128xf32> to vector<16x128xbf16>
    %c0_36 = arith.constant 0 : index
    %c0_37 = arith.constant 0 : index
    %88 = vector.load %arg4[%c0_36, %c0_37] : memref<16x16xbf16, #tpu.memory_space<vmem>>, vector<16x16xbf16>
    %cst_38 = arith.constant dense<0.000000e+00> : vector<16x128xf32>
    %89 = tpu.matmul %88, %87, %cst_38 {dimension_numbers = #tpu.dot_dimension_numbers<[1], [0], [0], [1], [0, 0, 1, 1], [], []>} : vector<16x16xbf16>, vector<16x128xbf16>, vector<16x128xf32> -> vector<16x128xf32>
    %90 = vector.broadcast %5 : vector<16x1xf32> to vector<16x128xf32>
    %91 = arith.addf %89, %90 : vector<16x128xf32>
    %c0_39 = arith.constant 0 : index
    %c0_40 = arith.constant 0 : index
    %c0_41 = arith.constant 0 : index
    %92 = vector.load %arg1[%c0_39, %c0_40, %c0_41] : memref<1x16x128xf32, #tpu.memory_space<vmem>>, vector<1x16x128xf32>
    %93 = vector.shape_cast %92 : vector<1x16x128xf32> to vector<16x128xf32>
    %94 = arith.addf %91, %93 : vector<16x128xf32>
    %c0_42 = arith.constant 0 : index
    %c0_43 = arith.constant 0 : index
    %c0_44 = arith.constant 0 : index
    %95 = vector.load %arg7[%c0_42, %c0_43, %c0_44] : memref<1x16x128xf32, #tpu.memory_space<vmem>>, vector<1x16x128xf32>
    %96 = vector.shape_cast %95 : vector<1x16x128xf32> to vector<16x128xf32>
    %97 = vector.shape_cast %94 : vector<16x128xf32> to vector<1x16x128xf32>
    tpu.vector_store %arg7[%c0_42, %c0_43, %c0_44], %97 {strides = array<i32>} : memref<1x16x128xf32, #tpu.memory_space<vmem>>, vector<1x16x128xf32>,
    return
  }
  func.func @transform_0(%arg0: i32) -> (i32, i32, i32) {
    %c0_i32 = arith.constant 0 : i32
    %c0_i32_0 = arith.constant 0 : i32
    %c0_i32_1 = arith.constant 0 : i32
    return %arg0, %c0_i32, %c0_i32_0 : i32, i32, i32
  }
  func.func @transform_1(%arg0: i32) -> (i32, i32) {
    %c0_i32 = arith.constant 0 : i32
    %c0_i32_0 = arith.constant 0 : i32
    %c0_i32_1 = arith.constant 0 : i32
    return %c0_i32, %c0_i32_0 : i32, i32
  }
  func.func @transform_2(%arg0: i32) -> (i32, i32) {
    %c0_i32 = arith.constant 0 : i32
    %c0_i32_0 = arith.constant 0 : i32
    %c0_i32_1 = arith.constant 0 : i32
    return %c0_i32, %c0_i32_0 : i32, i32
  }
  func.func @transform_3(%arg0: i32) -> (i32, i32) {
    %c0_i32 = arith.constant 0 : i32
    %c0_i32_0 = arith.constant 0 : i32
    %c0_i32_1 = arith.constant 0 : i32
    return %c0_i32, %c0_i32_0 : i32, i32
  }
  func.func @transform_4(%arg0: i32) -> (i32, i32) {
    %c0_i32 = arith.constant 0 : i32
    %c0_i32_0 = arith.constant 0 : i32
    %c0_i32_1 = arith.constant 0 : i32
    return %c0_i32, %c0_i32_0 : i32, i32
  }
  func.func @transform_5(%arg0: i32) -> (i32, i32) {
    %c0_i32 = arith.constant 0 : i32
    %c0_i32_0 = arith.constant 0 : i32
    %c0_i32_1 = arith.constant 0 : i32
    return %c0_i32, %c0_i32_0 : i32, i32
  }
  func.func @transform_6(%arg0: i32) -> (i32, i32, i32) {
    %c0_i32 = arith.constant 0 : i32
    %c0_i32_0 = arith.constant 0 : i32
    %c0_i32_1 = arith.constant 0 : i32
    return %arg0, %c0_i32, %c0_i32_0 : i32, i32, i32
  }
}

module attributes {stable_mosaic.version = 11 : i64} {
  func.func @_oafilter_kernel(%arg0: i32, %arg1: memref<1x16x128xf32, #tpu.memory_space<vmem>>, %arg2: memref<16x16xbf16, #tpu.memory_space<vmem>>, %arg3: memref<128x128xbf16, #tpu.memory_space<vmem>>, %arg4: memref<16x16xbf16, #tpu.memory_space<vmem>>, %arg5: memref<16x6xf32, #tpu.memory_space<vmem>>, %arg6: memref<3x128xf32, #tpu.memory_space<vmem>>, %arg7: memref<1x16x128xf32, #tpu.memory_space<vmem>>) attributes {dimension_semantics = [#tpu.dimension_semantics<parallel>], iteration_bounds = array<i64: 2>, scalar_prefetch = 0 : i64, scratch_operands = 0 : i64, tpu.core_type = #tpu.core_type<tc>, window_params = [{transform_indices = @transform_0, window_bounds = array<i64: 1, 16, 128>}, {pipeline_mode = #tpu.pipeline_mode<synchronous>, transform_indices = @transform_1, window_bounds = array<i64: 16, 16>}, {pipeline_mode = #tpu.pipeline_mode<synchronous>, transform_indices = @transform_2, window_bounds = array<i64: 128, 128>}, {pipeline_mode = #tpu.pipeline_mode<synchronous>, transform_indices = @transform_3, window_bounds = array<i64: 16, 16>}, {pipeline_mode = #tpu.pipeline_mode<synchronous>, transform_indices = @transform_4, window_bounds = array<i64: 16, 6>}, {pipeline_mode = #tpu.pipeline_mode<synchronous>, transform_indices = @transform_5, window_bounds = array<i64: 3, 128>}, {transform_indices = @transform_6, window_bounds = array<i64: 1, 16, 128>}]} {
    %c0 = arith.constant 0 : index
    %c0_0 = arith.constant 0 : index
    %0 = vector.load %arg5[%c0, %c0_0] : memref<16x6xf32, #tpu.memory_space<vmem>>, vector<16x1xf32>
    %c0_1 = arith.constant 0 : index
    %c1 = arith.constant 1 : index
    %1 = vector.load %arg5[%c0_1, %c1] : memref<16x6xf32, #tpu.memory_space<vmem>>, vector<16x1xf32>
    %c0_2 = arith.constant 0 : index
    %c2 = arith.constant 2 : index
    %2 = vector.load %arg5[%c0_2, %c2] : memref<16x6xf32, #tpu.memory_space<vmem>>, vector<16x1xf32>
    %c0_3 = arith.constant 0 : index
    %c3 = arith.constant 3 : index
    %3 = vector.load %arg5[%c0_3, %c3] : memref<16x6xf32, #tpu.memory_space<vmem>>, vector<16x1xf32>
    %c0_4 = arith.constant 0 : index
    %c4 = arith.constant 4 : index
    %4 = vector.load %arg5[%c0_4, %c4] : memref<16x6xf32, #tpu.memory_space<vmem>>, vector<16x1xf32>
    %c0_5 = arith.constant 0 : index
    %c5 = arith.constant 5 : index
    %5 = vector.load %arg5[%c0_5, %c5] : memref<16x6xf32, #tpu.memory_space<vmem>>, vector<16x1xf32>
    %c0_6 = arith.constant 0 : index
    %c0_7 = arith.constant 0 : index
    %6 = vector.load %arg6[%c0_6, %c0_7] : memref<3x128xf32, #tpu.memory_space<vmem>>, vector<1x128xf32>
    %c1_8 = arith.constant 1 : index
    %c0_9 = arith.constant 0 : index
    %7 = vector.load %arg6[%c1_8, %c0_9] : memref<3x128xf32, #tpu.memory_space<vmem>>, vector<1x128xf32>
    %c2_10 = arith.constant 2 : index
    %c0_11 = arith.constant 0 : index
    %8 = vector.load %arg6[%c2_10, %c0_11] : memref<3x128xf32, #tpu.memory_space<vmem>>, vector<1x128xf32>
    %c0_12 = arith.constant 0 : index
    %c0_13 = arith.constant 0 : index
    %c0_14 = arith.constant 0 : index
    %9 = vector.load %arg1[%c0_12, %c0_13, %c0_14] : memref<1x16x128xf32, #tpu.memory_space<vmem>>, vector<1x16x128xf32>
    %10 = vector.shape_cast %9 : vector<1x16x128xf32> to vector<16x128xf32>
    %cst = arith.constant dense<0.000000e+00> : vector<16xf32>
    %11 = vector.multi_reduction <add>, %10, %cst [1] : vector<16x128xf32> to vector<16xf32>
    %12 = vector.shape_cast %11 : vector<16xf32> to vector<16x1xf32>
    %cst_15 = arith.constant 6.250000e-02 : f32
    %13 = vector.broadcast %cst_15 : f32 to vector<16x1xf32>
    %14 = arith.mulf %12, %13 : vector<16x1xf32>
    %15 = arith.mulf %10, %10 : vector<16x128xf32>
    %cst_16 = arith.constant dense<0.000000e+00> : vector<16xf32>
    %16 = vector.multi_reduction <add>, %15, %cst_16 [1] : vector<16x128xf32> to vector<16xf32>
    %17 = vector.shape_cast %16 : vector<16xf32> to vector<16x1xf32>
    %cst_17 = arith.constant 6.250000e-02 : f32
    %18 = vector.broadcast %cst_17 : f32 to vector<16x1xf32>
    %19 = arith.mulf %17, %18 : vector<16x1xf32>
    %20 = arith.mulf %14, %14 : vector<16x1xf32>
    %21 = arith.subf %19, %20 : vector<16x1xf32>
    %cst_18 = arith.constant 0.000000e+00 : f32
    %22 = vector.broadcast %cst_18 : f32 to vector<16x1xf32>
    %23 = arith.maximumf %21, %22 : vector<16x1xf32>
    %24 = vector.broadcast %14 : vector<16x1xf32> to vector<16x128xf32>
    %25 = arith.subf %10, %24 : vector<16x128xf32>
    %cst_19 = arith.constant 1.000000e-03 : f32
    %26 = vector.broadcast %cst_19 : f32 to vector<16x1xf32>
    %27 = arith.addf %23, %26 : vector<16x1xf32>
    %28 = math.rsqrt %27 : vector<16x1xf32>
    %29 = vector.broadcast %28 : vector<16x1xf32> to vector<16x128xf32>
    %30 = arith.mulf %25, %29 : vector<16x128xf32>
    %31 = vector.broadcast %1 : vector<16x1xf32> to vector<16x128xf32>
    %32 = arith.mulf %30, %31 : vector<16x128xf32>
    %33 = vector.broadcast %2 : vector<16x1xf32> to vector<16x128xf32>
    %34 = arith.addf %32, %33 : vector<16x128xf32>
    %cst_20 = arith.constant 0.000000e+00 : f32
    %35 = vector.broadcast %cst_20 : f32 to vector<16x128xf32>
    %36 = arith.maximumf %34, %35 : vector<16x128xf32>
    %37 = arith.truncf %36 : vector<16x128xf32> to vector<16x128xbf16>
    %c0_21 = arith.constant 0 : index
    %c0_22 = arith.constant 0 : index
    %38 = vector.load %arg2[%c0_21, %c0_22] : memref<16x16xbf16, #tpu.memory_space<vmem>>, vector<16x16xbf16>
    %cst_23 = arith.constant dense<0.000000e+00> : vector<16x128xf32>
    %39 = tpu.matmul %38, %37, %cst_23 {dimension_numbers = #tpu.dot_dimension_numbers<[1], [0], [0], [1], [0, 0, 1, 1], [], []>} : vector<16x16xbf16>, vector<16x128xbf16>, vector<16x128xf32> -> vector<16x128xf32>
    %40 = vector.broadcast %0 : vector<16x1xf32> to vector<16x128xf32>
    %41 = arith.addf %39, %40 : vector<16x128xf32>
    %42 = tpu.iota {dimensions = array<i32: 1>} : vector<1x128xi32>
    %c16_i32 = arith.constant 16 : i32
    %43 = vector.broadcast %c16_i32 : i32 to vector<1x128xi32>
    %44 = arith.cmpi slt, %42, %43 : vector<1x128xi32>
    %cst_24 = arith.constant 0.000000e+00 : f32
    %45 = vector.shape_cast %44 : vector<1x128xi1> to vector<1x128xi1>
    %46 = vector.broadcast %45 : vector<1x128xi1> to vector<16x128xi1>
    %47 = vector.broadcast %cst_24 : f32 to vector<16x128xf32>
    %48 = arith.select %46, %41, %47 : vector<16x128xi1>, vector<16x128xf32>
    %49 = vector.broadcast %6 : vector<1x128xf32> to vector<16x128xf32>
    %50 = arith.mulf %48, %49 : vector<16x128xf32>
    %51 = vector.broadcast %7 : vector<1x128xf32> to vector<16x128xf32>
    %52 = arith.addf %50, %51 : vector<16x128xf32>
    %cst_25 = arith.constant 0.000000e+00 : f32
    %53 = vector.broadcast %cst_25 : f32 to vector<16x128xf32>
    %54 = arith.maximumf %52, %53 : vector<16x128xf32>
    %55 = arith.truncf %54 : vector<16x128xf32> to vector<16x128xbf16>
    %c0_26 = arith.constant 0 : index
    %c0_27 = arith.constant 0 : index
    %56 = vector.load %arg3[%c0_26, %c0_27] : memref<128x128xbf16, #tpu.memory_space<vmem>>, vector<128x128xbf16>
    %cst_28 = arith.constant dense<0.000000e+00> : vector<16x128xf32>
    %57 = tpu.matmul %55, %56, %cst_28 {dimension_numbers = #tpu.dot_dimension_numbers<[1], [0], [0], [1], [0, 0, 1, 1], [], []>} : vector<16x128xbf16>, vector<128x128xbf16>, vector<16x128xf32> -> vector<16x128xf32>
    %58 = vector.broadcast %8 : vector<1x128xf32> to vector<16x128xf32>
    %59 = arith.addf %57, %58 : vector<16x128xf32>
    %60 = arith.addf %48, %59 : vector<16x128xf32>
    %cst_29 = arith.constant dense<0.000000e+00> : vector<16xf32>
    %61 = vector.multi_reduction <add>, %60, %cst_29 [1] : vector<16x128xf32> to vector<16xf32>
    %62 = vector.shape_cast %61 : vector<16xf32> to vector<16x1xf32>
    %cst_30 = arith.constant 6.250000e-02 : f32
    %63 = vector.broadcast %cst_30 : f32 to vector<16x1xf32>
    %64 = arith.mulf %62, %63 : vector<16x1xf32>
    %65 = arith.mulf %60, %60 : vector<16x128xf32>
    %cst_31 = arith.constant dense<0.000000e+00> : vector<16xf32>
    %66 = vector.multi_reduction <add>, %65, %cst_31 [1] : vector<16x128xf32> to vector<16xf32>
    %67 = vector.shape_cast %66 : vector<16xf32> to vector<16x1xf32>
    %cst_32 = arith.constant 6.250000e-02 : f32
    %68 = vector.broadcast %cst_32 : f32 to vector<16x1xf32>
    %69 = arith.mulf %67, %68 : vector<16x1xf32>
    %70 = arith.mulf %64, %64 : vector<16x1xf32>
    %71 = arith.subf %69, %70 : vector<16x1xf32>
    %cst_33 = arith.constant 0.000000e+00 : f32
    %72 = vector.broadcast %cst_33 : f32 to vector<16x1xf32>
    %73 = arith.maximumf %71, %72 : vector<16x1xf32>
    %74 = vector.broadcast %64 : vector<16x1xf32> to vector<16x128xf32>
    %75 = arith.subf %60, %74 : vector<16x128xf32>
    %cst_34 = arith.constant 1.000000e-03 : f32
    %76 = vector.broadcast %cst_34 : f32 to vector<16x1xf32>
    %77 = arith.addf %73, %76 : vector<16x1xf32>
    %78 = math.rsqrt %77 : vector<16x1xf32>
    %79 = vector.broadcast %78 : vector<16x1xf32> to vector<16x128xf32>
    %80 = arith.mulf %75, %79 : vector<16x128xf32>
    %81 = vector.broadcast %3 : vector<16x1xf32> to vector<16x128xf32>
    %82 = arith.mulf %80, %81 : vector<16x128xf32>
    %83 = vector.broadcast %4 : vector<16x1xf32> to vector<16x128xf32>
    %84 = arith.addf %82, %83 : vector<16x128xf32>
    %cst_35 = arith.constant 0.000000e+00 : f32
    %85 = vector.broadcast %cst_35 : f32 to vector<16x128xf32>
    %86 = arith.maximumf %84, %85 : vector<16x128xf32>
    %87 = arith.truncf %86 : vector<16x128xf32> to vector<16x128xbf16>
    %c0_36 = arith.constant 0 : index
    %c0_37 = arith.constant 0 : index
    %88 = vector.load %arg4[%c0_36, %c0_37] : memref<16x16xbf16, #tpu.memory_space<vmem>>, vector<16x16xbf16>
    %cst_38 = arith.constant dense<0.000000e+00> : vector<16x128xf32>
    %89 = tpu.matmul %88, %87, %cst_38 {dimension_numbers = #tpu.dot_dimension_numbers<[1], [0], [0], [1], [0, 0, 1, 1], [], []>} : vector<16x16xbf16>, vector<16x128xbf16>, vector<16x128xf32> -> vector<16x128xf32>
    %90 = vector.broadcast %5 : vector<16x1xf32> to vector<16x128xf32>
    %91 = arith.addf %89, %90 : vector<16x128xf32>
    %c0_39 = arith.constant 0 : index
    %c0_40 = arith.constant 0 : index
    %c0_41 = arith.constant 0 : index
    %92 = vector.load %arg1[%c0_39, %c0_40, %c0_41] : memref<1x16x128xf32, #tpu.memory_space<vmem>>, vector<1x16x128xf32>
    %93 = vector.shape_cast %92 : vector<1x16x128xf32> to vector<16x128xf32>
    %94 = arith.addf %91, %93 : vector<16x128xf32>
    %c0_42 = arith.constant 0 : index
    %c0_43 = arith.constant 0 : index
    %c0_44 = arith.constant 0 : index
    %95 = vector.load %arg7[%c0_42, %c0_43, %c0_44] : memref<1x16x128xf32, #tpu.memory_space<vmem>>, vector<1x16x128xf32>
    %96 = vector.shape_cast %95 : vector<1x16x128xf32> to vector<16x128xf32>
    %97 = vector.shape_cast %94 : vector<16x128xf32> to vector<1x16x128xf32>
    tpu.vector_store %arg7[%c0_42, %c0_43, %c0_44], %97 {strides = array<i32>} : memref<1x16x128xf32, #tpu.memory_space<vmem>>, vector<1x16x128xf32>,
    return
  }
  func.func @transform_0(%arg0: i32) -> (i32, i32, i32) {
    %c0_i32 = arith.constant 0 : i32
    %c0_i32_0 = arith.constant 0 : i32
    %c0_i32_1 = arith.constant 0 : i32
    return %arg0, %c0_i32, %c0_i32_0 : i32, i32, i32
  }
  func.func @transform_1(%arg0: i32) -> (i32, i32) {
    %c0_i32 = arith.constant 0 : i32
    %c0_i32_0 = arith.constant 0 : i32
    %c0_i32_1 = arith.constant 0 : i32
    return %c0_i32, %c0_i32_0 : i32, i32
  }
  func.func @transform_2(%arg0: i32) -> (i32, i32) {
    %c0_i32 = arith.constant 0 : i32
    %c0_i32_0 = arith.constant 0 : i32
    %c0_i32_1 = arith.constant 0 : i32
    return %c0_i32, %c0_i32_0 : i32, i32
  }
  func.func @transform_3(%arg0: i32) -> (i32, i32) {
    %c0_i32 = arith.constant 0 : i32
    %c0_i32_0 = arith.constant 0 : i32
    %c0_i32_1 = arith.constant 0 : i32
    return %c0_i32, %c0_i32_0 : i32, i32
  }
  func.func @transform_4(%arg0: i32) -> (i32, i32) {
    %c0_i32 = arith.constant 0 : i32
    %c0_i32_0 = arith.constant 0 : i32
    %c0_i32_1 = arith.constant 0 : i32
    return %c0_i32, %c0_i32_0 : i32, i32
  }
  func.func @transform_5(%arg0: i32) -> (i32, i32) {
    %c0_i32 = arith.constant 0 : i32
    %c0_i32_0 = arith.constant 0 : i32
    %c0_i32_1 = arith.constant 0 : i32
    return %c0_i32, %c0_i32_0 : i32, i32
  }
  func.func @transform_6(%arg0: i32) -> (i32, i32, i32) {
    %c0_i32 = arith.constant 0 : i32
    %c0_i32_0 = arith.constant 0 : i32
    %c0_i32_1 = arith.constant 0 : i32
    return %arg0, %c0_i32, %c0_i32_0 : i32, i32, i32
  }
}

</mosaic_0001>

<llo_original>
// kernel: tpu_custom_call.1
$region0: #{tpu_custom_call.1}
  #allocation0 [shape = 'u32[]', space=smem, size = 0x4, offset = 0x4, fixed_abs, tag = 'smem constant byte address 0x4 - core index']
  #allocation1 [shape = 'u32[144,128]{1,0:T(1,128)}', space=vmem, size = 0x12000, scoped, tag = 'internal scratch']
  %s0 = inlined_call_operand.hbm [shape: f32[2,16,128], index: 0, kind: input, shape index: {}]
  %s1 = inlined_call_operand.vmem [shape: bf16[16,16], index: 1, kind: input, shape index: {}]
  %s2 = inlined_call_operand.hbm [shape: bf16[128,128], index: 2, kind: input, shape index: {}]
  %s3 = inlined_call_operand.vmem [shape: bf16[16,16], index: 3, kind: input, shape index: {}]
  %s4 = inlined_call_operand.vmem [shape: f32[16,6], index: 4, kind: input, shape index: {}]
  %s5 = inlined_call_operand.vmem [shape: f32[3,128], index: 5, kind: input, shape index: {}]
  %s6 = inlined_call_operand.hbm [shape: f32[2,16,128], index: 6, kind: output, shape index: {}]
  %s7 = sld [smem:[#allocation0]]
  $region65: #{tpu_custom_call.1} parent=0
    _
  %s9 = ssub.s32 1, %s7
  %s10 = scalar_select 0, %s9, %s7
  $region1: #{tpu_custom_call.1} parent=0
    #allocation2 [shape = 'u8[16384]{0}', space=vmem, size = 0x4000, scoped, tag = 'input window, operand 0']
    #allocation3 [shape = 's32[2]{0}', space=sflag, size = 0x8, scoped, tag = 'scoped memory for tpu_custom_call.1']
    #allocation4 [shape = 's32[2]{0}', space=sflag, size = 0x8, scoped, tag = 'scoped memory for tpu_custom_call.1']
    #allocation5 [shape = 'u8[32768]{0}', space=vmem, size = 0x8000, scoped, tag = 'input window, operand 2, single buffered']
    #allocation6 [shape = 's32[1]{0}', space=sflag, size = 0x4, scoped, tag = 'scoped memory for tpu_custom_call.1']
    #allocation7 [shape = 'u8[16384]{0}', space=vmem, size = 0x4000, scoped, tag = 'output window, operand 0']
    %11 = vsyncpa [#allocation3], 0
    %s12 = scalar_lea.sflag [#allocation3], 1
    %13 = vsyncpa %s12, 0
    %14 = vsyncpa [#allocation6], 0
    %15 = vsyncpa [#allocation4], 0
    %s16 = scalar_lea.sflag [#allocation4], 1
    %17 = vsyncpa %s16, 0
    loop: start=0, step=1, limit=4
    $region2: #{tpu_custom_call.1} parent=1 // loop_pre_header
      _
    $region3: #{tpu_custom_call.1} parent=1 // loop_header
      %s19 = sphi 0, %s23
      %p20 = scmp.ge.s32.totalorder %s19, 4
      %s29 = sphi 0, %s31
      %s32 = sphi 0, %s29
      %s33 = sphi 0, %s32
      %s49 = sphi 0, %s33
      %s53 = sphi 0, %s53
      %s55 = sphi 0, %s53
      %s56 = sphi 0, %s55
      %s70 = sphi 0, %s56
      %s74 = sphi 0, %s74
      %s76 = sphi 0, %s74
      %s77 = sphi 0, %s76
      %s91 = sphi 0, %s77
      %s95 = sphi 0, %s95
      %s97 = sphi 0, %s95
      %s98 = sphi 0, %s97
      %s112 = sphi 0, %s98
      %s116 = sphi 0, %s116
      %s118 = sphi 0, %s116
      %s119 = sphi 0, %s118
      %s133 = sphi 0, %s119
      %s137 = sphi 0, %s137
      %s139 = sphi 0, %s137
      %s140 = sphi 0, %s139
      %s154 = sphi 0, %s140
      %s160 = sphi 0, %s162
      %s163 = sphi 0, %s160
      %s164 = sphi 0, %s163
      %s180 = sphi 0, %s164
    $region4: #{tpu_custom_call.1} parent=1 // loop_header_branch
      %22 = sbr.rel (%p20) target = $region8
    $region5: #{tpu_custom_call.1} parent=1 // loop_body
      %s24 = ssub.s32 %s19, 1
      %s25 = ssub.s32 %s19, 2
      %s26 = sadd.s32 %s19, 1
      %s27 = ssub.s32 %s19, %s26
      %p28 = scmp.eq.s32.totalorder %s27, 0
      %s30 = sadd.s32 %s29, 1
      %s31 = scalar_select %p28, %s29, %s30
      %p34 = pneg %p28
      %p35 = scmp.eq.s32.totalorder %s19, 1
      %p36 = por %p34, %p35
      %p37 = scmp.ne.s32.totalorder %s29, %s32
      %p38 = scmp.eq.s32.totalorder %s19, 0
      %p39 = por %p37, %p38
      %p40 = scmp.ne.s32.totalorder %s29, %s32
      %p41 = scmp.eq.s32.totalorder %s24, 1
      %p42 = por %p40, %p41
      %p43 = scmp.ne.s32.totalorder %s32, %s33
      %p44 = scmp.eq.s32.totalorder %s24, 0
      %p45 = por %p43, %p44
      %p46 = scmp.ne.s32.totalorder %s32, %s33
      %p47 = scmp.eq.s32.totalorder %s25, 1
      %p48 = por %p46, %p47
      %p50 = scmp.ne.s32.totalorder %s33, %s49
      %p51 = scmp.eq.s32.totalorder %s25, 0
      %p52 = por %p50, %p51
      %s54 = sadd.s32 %s53, 1
      %p57 = scmp.eq.s32.totalorder %s19, 1
      %p58 = scmp.ne.s32.totalorder %s53, %s55
      %p59 = scmp.eq.s32.totalorder %s19, 0
      %p60 = por %p58, %p59
      %p61 = scmp.ne.s32.totalorder %s53, %s55
      %p62 = scmp.eq.s32.totalorder %s24, 1
      %p63 = por %p61, %p62
      %p64 = scmp.ne.s32.totalorder %s55, %s56
      %p65 = scmp.eq.s32.totalorder %s24, 0
      %p66 = por %p64, %p65
      %p67 = scmp.ne.s32.totalorder %s55, %s56
      %p68 = scmp.eq.s32.totalorder %s25, 1
      %p69 = por %p67, %p68
      %p71 = scmp.ne.s32.totalorder %s56, %s70
      %p72 = scmp.eq.s32.totalorder %s25, 0
      %p73 = por %p71, %p72
      %s75 = sadd.s32 %s74, 1
      %p78 = scmp.eq.s32.totalorder %s19, 1
      %p79 = scmp.ne.s32.totalorder %s74, %s76
      %p80 = scmp.eq.s32.totalorder %s19, 0
      %p81 = por %p79, %p80
      %p82 = scmp.ne.s32.totalorder %s74, %s76
      %p83 = scmp.eq.s32.totalorder %s24, 1
      %p84 = por %p82, %p83
      %p85 = scmp.ne.s32.totalorder %s76, %s77
      %p86 = scmp.eq.s32.totalorder %s24, 0
      %p87 = por %p85, %p86
      %p88 = scmp.ne.s32.totalorder %s76, %s77
      %p89 = scmp.eq.s32.totalorder %s25, 1
      %p90 = por %p88, %p89
      %p92 = scmp.ne.s32.totalorder %s77, %s91
      %p93 = scmp.eq.s32.totalorder %s25, 0
      %p94 = por %p92, %p93
      %s96 = sadd.s32 %s95, 1
      %p99 = scmp.eq.s32.totalorder %s19, 1
      %p100 = scmp.ne.s32.totalorder %s95, %s97
      %p101 = scmp.eq.s32.totalorder %s19, 0
      %p102 = por %p100, %p101
      %p103 = scmp.ne.s32.totalorder %s95, %s97
      %p104 = scmp.eq.s32.totalorder %s24, 1
      %p105 = por %p103, %p104
      %p106 = scmp.ne.s32.totalorder %s97, %s98
      %p107 = scmp.eq.s32.totalorder %s24, 0
      %p108 = por %p106, %p107
      %p109 = scmp.ne.s32.totalorder %s97, %s98
      %p110 = scmp.eq.s32.totalorder %s25, 1
      %p111 = por %p109, %p110
      %p113 = scmp.ne.s32.totalorder %s98, %s112
      %p114 = scmp.eq.s32.totalorder %s25, 0
      %p115 = por %p113, %p114
      %s117 = sadd.s32 %s116, 1
      %p120 = scmp.eq.s32.totalorder %s19, 1
      %p121 = scmp.ne.s32.totalorder %s116, %s118
      %p122 = scmp.eq.s32.totalorder %s19, 0
      %p123 = por %p121, %p122
      %p124 = scmp.ne.s32.totalorder %s116, %s118
      %p125 = scmp.eq.s32.totalorder %s24, 1
      %p126 = por %p124, %p125
      %p127 = scmp.ne.s32.totalorder %s118, %s119
      %p128 = scmp.eq.s32.totalorder %s24, 0
      %p129 = por %p127, %p128
      %p130 = scmp.ne.s32.totalorder %s118, %s119
      %p131 = scmp.eq.s32.totalorder %s25, 1
      %p132 = por %p130, %p131
      %p134 = scmp.ne.s32.totalorder %s119, %s133
      %p135 = scmp.eq.s32.totalorder %s25, 0
      %p136 = por %p134, %p135
      %s138 = sadd.s32 %s137, 1
      %p141 = scmp.eq.s32.totalorder %s19, 1
      %p142 = scmp.ne.s32.totalorder %s137, %s139
      %p143 = scmp.eq.s32.totalorder %s19, 0
      %p144 = por %p142, %p143
      %p145 = scmp.ne.s32.totalorder %s137, %s139
      %p146 = scmp.eq.s32.totalorder %s24, 1
      %p147 = por %p145, %p146
      %p148 = scmp.ne.s32.totalorder %s139, %s140
      %p149 = scmp.eq.s32.totalorder %s24, 0
      %p150 = por %p148, %p149
      %p151 = scmp.ne.s32.totalorder %s139, %s140
      %p152 = scmp.eq.s32.totalorder %s25, 1
      %p153 = por %p151, %p152
      %p155 = scmp.ne.s32.totalorder %s140, %s154
      %p156 = scmp.eq.s32.totalorder %s25, 0
      %p157 = por %p155, %p156
      %s158 = ssub.s32 %s19, %s26
      %p159 = scmp.eq.s32.totalorder %s158, 0
      %s161 = sadd.s32 %s160, 1
      %s162 = scalar_select %p159, %s160, %s161
      %p165 = pneg %p159
      %p166 = scmp.eq.s32.totalorder %s19, 1
      %p167 = por %p165, %p166
      %p168 = scmp.ne.s32.totalorder %s160, %s163
      %p169 = scmp.eq.s32.totalorder %s19, 0
      %p170 = por %p168, %p169
      %p171 = scmp.ne.s32.totalorder %s160, %s163
      %p172 = scmp.eq.s32.totalorder %s24, 1
      %p173 = por %p171, %p172
      %p174 = scmp.ne.s32.totalorder %s163, %s164
      %p175 = scmp.eq.s32.totalorder %s24, 0
      %p176 = por %p174, %p175
      %p177 = scmp.ne.s32.totalorder %s163, %s164
      %p178 = scmp.eq.s32.totalorder %s25, 1
      %p179 = por %p177, %p178
      %p181 = scmp.ne.s32.totalorder %s164, %s180
      %p182 = scmp.eq.s32.totalorder %s25, 0
      %p183 = por %p181, %p182
      %p184 = scmp.le.s32.totalorder 1, %s19
      %p185 = scmp.lt.s32.totalorder %s19, 3
      %p186 = pnand %p184, %p185
      %p187 = pneg %p186
      // Predicated region
      $region9: #{tpu_custom_call.1} parent=5 // pred_check
        _
      $region10: #{tpu_custom_call.1} parent=5 // pred_check_branch
        %189 = sbr.rel (%p186) target = $region12
      $region11: #{tpu_custom_call.1} parent=5 // pred_region
        %s190 = ssub.s32 %s19, 1
        // Predicated region
        $region13: #{tpu_custom_call.1} parent=11 // pred_check
          %p191 = pneg %p66
        $region14: #{tpu_custom_call.1} parent=11 // pred_check_branch
          %193 = sbr.rel (%p191) target = $region16
        $region15: #{tpu_custom_call.1} parent=11 // pred_region
          _
        $region16: #{tpu_custom_call.1} parent=11 // pred_fallthru
          _
        // Predicated region
        $region17: #{tpu_custom_call.1} parent=11 // pred_check
          %p194 = pneg %p87
        $region18: #{tpu_custom_call.1} parent=11 // pred_check_branch
          %196 = sbr.rel (%p194) target = $region20
        $region19: #{tpu_custom_call.1} parent=11 // pred_region
          %s198 = ssub.s32 1024, 1024
          %199 = vsyncadd [#allocation6], %s198
          %s200 = sshll.u32 [#allocation5], 4
          %s201 = int_to_ptr.vmem [resolvable:$true] %s200
          %206 = dma.hbm_to_vmem [thread:$0]  %s2, 1024, %s201, [#allocation6], 64, 64, 4
        $region20: #{tpu_custom_call.1} parent=11 // pred_fallthru
          _
        // Predicated region
        $region21: #{tpu_custom_call.1} parent=11 // pred_check
          %p207 = pneg %p108
        $region22: #{tpu_custom_call.1} parent=11 // pred_check_branch
          %209 = sbr.rel (%p207) target = $region24
        $region23: #{tpu_custom_call.1} parent=11 // pred_region
          _
        $region24: #{tpu_custom_call.1} parent=11 // pred_fallthru
          _
        // Predicated region
        $region25: #{tpu_custom_call.1} parent=11 // pred_check
          %p210 = pneg %p129
        $region26: #{tpu_custom_call.1} parent=11 // pred_check_branch
          %212 = sbr.rel (%p210) target = $region28
        $region27: #{tpu_custom_call.1} parent=11 // pred_region
          _
        $region28: #{tpu_custom_call.1} parent=11 // pred_fallthru
          _
        // Predicated region
        $region29: #{tpu_custom_call.1} parent=11 // pred_check
          %p213 = pneg %p150
        $region30: #{tpu_custom_call.1} parent=11 // pred_check_branch
          %215 = sbr.rel (%p213) target = $region32
        $region31: #{tpu_custom_call.1} parent=11 // pred_region
          _
        $region32: #{tpu_custom_call.1} parent=11 // pred_fallthru
          _
      $region12: #{tpu_custom_call.1} parent=5 // pred_fallthru
        _
      %p216 = scmp.lt.s32.totalorder %s19, 2
      // Predicated region
      $region33: #{tpu_custom_call.1} parent=5 // pred_check
        %p217 = pneg %p216
      $region34: #{tpu_custom_call.1} parent=5 // pred_check_branch
        %219 = sbr.rel (%p217) target = $region36
      $region35: #{tpu_custom_call.1} parent=5 // pred_region
        // Predicated region
        $region37: #{tpu_custom_call.1} parent=35 // pred_check
          %p220 = pneg %p39
        $region38: #{tpu_custom_call.1} parent=35 // pred_check_branch
          %222 = sbr.rel (%p220) target = $region40
        $region39: #{tpu_custom_call.1} parent=35 // pred_region
          %s223 = sand.u32 %s29, 1
          %s224 = scalar_lea.sflag [#allocation3], %s223
          %s225 = sand.u32 %s29, 1
          %s226 = smul.addr %s225, 16
          %s227 = scalar_lea.vmem [#allocation2], %s226
          %s229 = ssub.s32 256, 256
          %230 = vsyncadd %s224, %s229
          %s231 = smul.addr %s19, 2
          %s232 = smul.addr %s231, 128
          %s233 = scalar_lea.hbm %s0, %s232
          %s234 = sshll.u32 %s227, 4
          %s235 = int_to_ptr.vmem [resolvable:$true] %s234
          %240 = dma.hbm_to_vmem [thread:$0]  %s233, 256, %s235, %s224, 128, 128, 8
        $region40: #{tpu_custom_call.1} parent=35 // pred_fallthru
          _
      $region36: #{tpu_custom_call.1} parent=5 // pred_fallthru
        _
      %p241 = scmp.le.s32.totalorder 1, %s19
      %p242 = scmp.lt.s32.totalorder %s19, 3
      %p243 = pnand %p241, %p242
      %p244 = pneg %p243
      // Predicated region
      $region41: #{tpu_custom_call.1} parent=5 // pred_check
        _
      $region42: #{tpu_custom_call.1} parent=5 // pred_check_branch
        %246 = sbr.rel (%p243) target = $region44
      $region43: #{tpu_custom_call.1} parent=5 // pred_region
        %s247 = ssub.s32 %s19, 1
        %s248 = sand.u32 %s32, 1
        %s249 = scalar_lea.sflag [#allocation3], %s248
        %s250 = sand.u32 %s32, 1
        %s251 = smul.addr %s250, 16
        %s252 = scalar_lea.vmem [#allocation2], %s251
        // Predicated region
        $region45: #{tpu_custom_call.1} parent=43 // pred_check
          %p253 = pneg %p45
        $region46: #{tpu_custom_call.1} parent=43 // pred_check_branch
          %255 = sbr.rel (%p253) target = $region48
        $region47: #{tpu_custom_call.1} parent=43 // pred_region
          %256 = dma.done %s249, 256
        $region48: #{tpu_custom_call.1} parent=43 // pred_fallthru
          _
        // Predicated region
        $region49: #{tpu_custom_call.1} parent=43 // pred_check
          %p257 = pneg %p87
        $region50: #{tpu_custom_call.1} parent=43 // pred_check_branch
          %259 = sbr.rel (%p257) target = $region52
        $region51: #{tpu_custom_call.1} parent=43 // pred_region
          %260 = dma.done [#allocation6], 1024
        $region52: #{tpu_custom_call.1} parent=43 // pred_fallthru
          _
        %s261 = sand.u32 %s32, 1
        %s262 = scalar_lea.sflag [#allocation3], %s261
        %s263 = sand.u32 %s32, 1
        %s264 = smul.addr %s263, 16
        %s265 = scalar_lea.vmem [#allocation2], %s264
        %p266 = pneg %p45
        %p267 = pneg %p42
        %p268 = pneg %p66
        %p269 = pneg %p63
        %p270 = pneg %p87
        %p271 = pneg %p84
        %p272 = pneg %p108
        %p273 = pneg %p105
        %p274 = pneg %p129
        %p275 = pneg %p126
        %p276 = pneg %p150
        %p277 = pneg %p147
        %p278 = pneg %p176
        %p279 = pneg %p173
        %s280 = sand.u32 %s163, 1
        %s281 = scalar_lea.sflag [#allocation4], %s280
        %s282 = sand.u32 %s163, 1
        %s283 = smul.addr %s282, 16
        %s284 = scalar_lea.vmem [#allocation7], %s283
        %v286 = vld [vmem:[%s4] sm:$0xff]
        %v287 = vld [vmem:[%s4 + $0x8] sm:$0xff]
        %v288 = vld [vmem:[%s5] sm:$0x1]
        %v289 = vld [vmem:[%s5 + $0x1] sm:$0x1]
        %v290 = vld [vmem:[%s5 + $0x2] sm:$0x1]
        %v291 = vld [vmem:[%s252] sm:$0xff]
        %v292 = vld [vmem:[%s252 + $0x8] sm:$0xff]
        %293 = vadd.xlane.f32.xlu0 %v291
        %v294 = vpop.xlane.xlu0 %293
        %295 = vadd.xlane.f32.xlu0 %v292
        %v296 = vpop.xlane.xlu0 %295
        %v297 = vmul.f32 %v294, 0.0625
        %v298 = vmul.f32 %v296, 0.0625
        %v299 = vmul.f32 %v291, %v291
        %v300 = vmul.f32 %v292, %v292
        %301 = vadd.xlane.f32.xlu0 %v299
        %v302 = vpop.xlane.xlu0 %301
        %303 = vadd.xlane.f32.xlu0 %v300
        %v304 = vpop.xlane.xlu0 %303
        %v305 = vmul.f32 %v302, 0.0625
        %v306 = vmul.f32 %v304, 0.0625
        %v307 = vmul.f32 %v297, %v297
        %v308 = vmul.f32 %v298, %v298
        %v309 = vsub.f32 %v305, %v307
        %v310 = vsub.f32 %v306, %v308
        %v311 = vmax.f32 %v309, 0.0
        %v312 = vmax.f32 %v310, 0.0
        %v313 = vsub.f32 %v291, %v297
        %v314 = vsub.f32 %v292, %v298
        %v315 = vadd.f32 %v311, 0.001
        %v316 = vadd.f32 %v312, 0.001
        %v317 = vrsqrt.pop %v315
        %v318 = vrsqrt.pop %v316
        %v319 = vmul.f32 %v313, %v317
        %v320 = vmul.f32 %v314, %v318
        %322 = vset.pattern.permute.xlu0 1
        %323 = vperm.xlu0 %322, %v286
        %v324 = vpop.permute.xlu0 %323
        %327 = vset.pattern.permute.xlu0 1
        %328 = vperm.xlu0 %327, %v287
        %v329 = vpop.permute.xlu0 %328
        %v331 = vmul.f32 %v319, %v324
        %v332 = vmul.f32 %v320, %v329
        %333 = vset.pattern.permute.xlu0 2
        %334 = vperm.xlu0 %333, %v286
        %v335 = vpop.permute.xlu0 %334
        %337 = vset.pattern.permute.xlu0 2
        %338 = vperm.xlu0 %337, %v287
        %v339 = vpop.permute.xlu0 %338
        %v341 = vadd.f32 %v331, %v335
        %v342 = vadd.f32 %v332, %v339
        %v343 = vmax.f32 %v341, 0.0
        %v344 = vmax.f32 %v342, 0.0
        %v345 = vpack.c.bf16 %v344, %v343
        %v346 = vld [vmem:[%s1] sm:$0xf]
        %v347 = vld [vmem:[%s1 + $0x4] sm:$0xf]
        %348 = vset.pattern.permute.xlu0 0
        %349 = vperm.xlu0 %348, %v286
        %v350 = vpop.permute.xlu0 %349
        %352 = vset.pattern.permute.xlu0 0
        %353 = vperm.xlu0 %352, %v287
        %v354 = vpop.permute.xlu0 %353
        %v358 = vunpack.c.l.b16 %v346
        %v359 = vunpack.c.l.b16 %v347
        %v360 = vpack.c.b16 %v359, %v358
        %vm361 = vcmask 130048
        %v363 = vsel %vm361, %v360, 0
        %365 = vmatprep.subr.bf16.mxu0 0
        %366 = vmatpush1.bf16.msra.mxu0 0
        %367 = vmatprep.subr.bf16.mxu0 0
        %368 = vmatpush1.bf16.msra.mxu0 0
        %369 = vmatprep.subr.bf16.mxu0 0
        %370 = vmatpush1.bf16.msra.mxu0 0
        %371 = vmatprep.subr.bf16.mxu0 0
        %372 = vmatpush1.bf16.msra.mxu0 0
        %373 = vmatprep.subr.bf16.mxu0 0
        %374 = vmatpush1.bf16.msra.mxu0 0
        %375 = vmatprep.subr.bf16.mxu0 0
        %376 = vmatpush1.bf16.msra.mxu0 0
        %377 = vmatprep.subr.bf16.mxu0 0
        %378 = vmatpush1.bf16.msra.mxu0 0
        %379 = vmatprep.subr.bf16.mxu0 0
        %380 = vmatpush1.bf16.msra.mxu0 %v345
        %381 = vmatprep.subr.bf16.mxu0 0
        %382 = vmatpush2.bf16.msra.mxu0 0
        %383 = vmatprep.subr.bf16.mxu0 0
        %384 = vmatpush2.bf16.msra.mxu0 0
        %385 = vmatprep.subr.bf16.mxu0 0
        %386 = vmatpush2.bf16.msra.mxu0 0
        %387 = vmatprep.subr.bf16.mxu0 0
        %388 = vmatpush2.bf16.msra.mxu0 0
        %389 = vmatprep.subr.bf16.mxu0 0
        %390 = vmatpush2.bf16.msra.mxu0 0
        %391 = vmatprep.subr.bf16.mxu0 0
        %392 = vmatpush2.bf16.msra.mxu0 0
        %393 = vmatprep.subr.bf16.mxu0 0
        %394 = vmatpush2.bf16.msra.mxu0 0
        %395 = vmatprep.subr.bf16.mxu0 0
        %396 = vmatpush2.bf16.msra.mxu0 0
        %397 = vmatprep.mubr.bf16.mxu0 0
        %398 = vmatmul.mubr.bf16.gmra.mxu0 %v363
        %v399 = vpop.f32.mrf.mxu0
        %v400 = vadd.f32 %v350, %v399
        %v401 = vpop.f32.mrf.mxu0
        %v402 = vpop.f32.mrf.mxu0
        %v403 = vadd.f32 %v354, %v402
        %v404 = vpop.f32.mrf.mxu0
        %405 = vdwg.mxu0
        %v406 = vlaneseq
        %v407 = vand.u32 %v406, 127
        %vm408 = vcmp.lt.s32.totalorder %v407, 16
        %v409 = vsel %vm408, 1, 0
        %vm410 = vcmp.eq.s32.totalorder %v409, 1
        %v411 = vsel %vm410, %v400, 0.0
        %v412 = vsel %vm410, %v403, 0.0
        %v413 = vlaneseq
        %v414 = vshrl.u32 %v413, 7
        %v415 = vsub.s32 0, %v414
        %v416 = vrot.slane %v288, %v415
        %v417 = vmul.f32 %v411, %v416
        %v418 = vmul.f32 %v412, %v416
        %v419 = vlaneseq
        %v420 = vshrl.u32 %v419, 7
        %v421 = vsub.s32 0, %v420
        %v422 = vrot.slane %v289, %v421
        %v423 = vadd.f32 %v417, %v422
        %v424 = vadd.f32 %v418, %v422
        %v425 = vmax.f32 %v423, 0.0
        %v426 = vmax.f32 %v424, 0.0
        %v427 = vpack.c.bf16 %v426, %v425
        %v428 = vld [vmem:[#allocation5] sm:$0xf]
        %v429 = vld [vmem:[#allocation5 + $0x4] sm:$0xf]
        %v430 = vld [vmem:[#allocation5 + $0x8] sm:$0xf]
        %v431 = vld [vmem:[#allocation5 + $0xc] sm:$0xf]
        %v432 = vld [vmem:[#allocation5 + $0x10] sm:$0xf]
        %v433 = vld [vmem:[#allocation5 + $0x14] sm:$0xf]
        %v434 = vld [vmem:[#allocation5 + $0x18] sm:$0xf]
        %v435 = vld [vmem:[#allocation5 + $0x1c] sm:$0xf]
        %v436 = vld [vmem:[#allocation5 + $0x20] sm:$0xf]
        %v437 = vld [vmem:[#allocation5 + $0x24] sm:$0xf]
        %v438 = vld [vmem:[#allocation5 + $0x28] sm:$0xf]
        %v439 = vld [vmem:[#allocation5 + $0x2c] sm:$0xf]
        %v440 = vld [vmem:[#allocation5 + $0x30] sm:$0xf]
        %v441 = vld [vmem:[#allocation5 + $0x34] sm:$0xf]
        %v442 = vld [vmem:[#allocation5 + $0x38] sm:$0xf]
        %v443 = vld [vmem:[#allocation5 + $0x3c] sm:$0xf]
        %v444 = vlaneseq
        %v445 = vshrl.u32 %v444, 7
        %v446 = vsub.s32 0, %v445
        %v447 = vrot.slane %v290, %v446
        %v464 = vunpack.c.l.b16 %v428
        %v465 = vunpack.c.l.b16 %v429
        %v466 = vunpack.c.l.b16 %v430
        %v467 = vunpack.c.l.b16 %v431
        %v468 = vunpack.c.l.b16 %v432
        %v469 = vunpack.c.l.b16 %v433
        %v470 = vunpack.c.l.b16 %v434
        %v471 = vunpack.c.l.b16 %v435
        %v472 = vunpack.c.l.b16 %v436
        %v473 = vunpack.c.l.b16 %v437
        %v474 = vunpack.c.l.b16 %v438
        %v475 = vunpack.c.l.b16 %v439
        %v476 = vunpack.c.l.b16 %v440
        %v477 = vunpack.c.l.b16 %v441
        %v478 = vunpack.c.l.b16 %v442
        %v479 = vunpack.c.l.b16 %v443
        %v480 = vpack.c.b16 %v465, %v464
        %v481 = vpack.c.b16 %v467, %v466
        %v482 = vpack.c.b16 %v469, %v468
        %v483 = vpack.c.b16 %v471, %v470
        %v484 = vpack.c.b16 %v473, %v472
        %v485 = vpack.c.b16 %v475, %v474
        %v486 = vpack.c.b16 %v477, %v476
        %v487 = vpack.c.b16 %v479, %v478
        %496 = vmatprep.subr.bf16.mxu0 0
        %497 = vmatpush1.bf16.msra.mxu0 %v487
        %498 = vmatprep.subr.bf16.mxu0 0
        %499 = vmatpush1.bf16.msra.mxu0 %v486
        %500 = vmatprep.subr.bf16.mxu0 0
        %501 = vmatpush1.bf16.msra.mxu0 %v485
        %502 = vmatprep.subr.bf16.mxu0 0
        %503 = vmatpush1.bf16.msra.mxu0 %v484
        %504 = vmatprep.subr.bf16.mxu0 0
        %505 = vmatpush1.bf16.msra.mxu0 %v483
        %506 = vmatprep.subr.bf16.mxu0 0
        %507 = vmatpush1.bf16.msra.mxu0 %v482
        %508 = vmatprep.subr.bf16.mxu0 0
        %509 = vmatpush1.bf16.msra.mxu0 %v481
        %510 = vmatprep.subr.bf16.mxu0 0
        %511 = vmatpush1.bf16.msra.mxu0 %v480
        %512 = vmatprep.subr.bf16.mxu0 0
        %513 = vmatpush2.bf16.msra.mxu0 0
        %514 = vmatprep.subr.bf16.mxu0 0
        %515 = vmatpush2.bf16.msra.mxu0 0
        %516 = vmatprep.subr.bf16.mxu0 0
        %517 = vmatpush2.bf16.msra.mxu0 0
        %518 = vmatprep.subr.bf16.mxu0 0
        %519 = vmatpush2.bf16.msra.mxu0 0
        %520 = vmatprep.subr.bf16.mxu0 0
        %521 = vmatpush2.bf16.msra.mxu0 0
        %522 = vmatprep.subr.bf16.mxu0 0
        %523 = vmatpush2.bf16.msra.mxu0 0
        %524 = vmatprep.subr.bf16.mxu0 0
        %525 = vmatpush2.bf16.msra.mxu0 0
        %526 = vmatprep.subr.bf16.mxu0 0
        %527 = vmatpush2.bf16.msra.mxu0 0
        %528 = vmatprep.mubr.bf16.mxu0 0
        %529 = vmatmul.mubr.bf16.gmra.mxu0 %v427
        %v530 = vpop.f32.mrf.mxu0
        %v531 = vadd.f32 %v447, %v530
        %v532 = vpop.f32.mrf.mxu0
        %v533 = vpop.f32.mrf.mxu0
        %v534 = vadd.f32 %v447, %v533
        %v535 = vpop.f32.mrf.mxu0
        %536 = vdwg.mxu0
        %v537 = vadd.f32 %v411, %v531
        %v538 = vadd.f32 %v412, %v534
        %539 = vadd.xlane.f32.xlu0 %v537
        %v540 = vpop.xlane.xlu0 %539
        %541 = vadd.xlane.f32.xlu0 %v538
        %v542 = vpop.xlane.xlu0 %541
        %v543 = vmul.f32 %v540, 0.0625
        %v544 = vmul.f32 %v542, 0.0625
        %v545 = vmul.f32 %v537, %v537
        %v546 = vmul.f32 %v538, %v538
        %547 = vadd.xlane.f32.xlu0 %v545
        %v548 = vpop.xlane.xlu0 %547
        %549 = vadd.xlane.f32.xlu0 %v546
        %v550 = vpop.xlane.xlu0 %549
        %v551 = vmul.f32 %v548, 0.0625
        %v552 = vmul.f32 %v550, 0.0625
        %v553 = vmul.f32 %v543, %v543
        %v554 = vmul.f32 %v544, %v544
        %v555 = vsub.f32 %v551, %v553
        %v556 = vsub.f32 %v552, %v554
        %v557 = vmax.f32 %v555, 0.0
        %v558 = vmax.f32 %v556, 0.0
        %v559 = vsub.f32 %v537, %v543
        %v560 = vsub.f32 %v538, %v544
        %v561 = vadd.f32 %v557, 0.001
        %v562 = vadd.f32 %v558, 0.001
        %v563 = vrsqrt.pop %v561
        %v564 = vrsqrt.pop %v562
        %v565 = vmul.f32 %v559, %v563
        %v566 = vmul.f32 %v560, %v564
        %567 = vset.pattern.permute.xlu0 3
        %568 = vperm.xlu0 %567, %v286
        %v569 = vpop.permute.xlu0 %568
        %571 = vset.pattern.permute.xlu0 3
        %572 = vperm.xlu0 %571, %v287
        %v573 = vpop.permute.xlu0 %572
        %v575 = vmul.f32 %v565, %v569
        %v576 = vmul.f32 %v566, %v573
        %577 = vset.pattern.permute.xlu0 4
        %578 = vperm.xlu0 %577, %v286
        %v579 = vpop.permute.xlu0 %578
        %581 = vset.pattern.permute.xlu0 4
        %582 = vperm.xlu0 %581, %v287
        %v583 = vpop.permute.xlu0 %582
        %v585 = vadd.f32 %v575, %v579
        %v586 = vadd.f32 %v576, %v583
        %v587 = vmax.f32 %v585, 0.0
        %v588 = vmax.f32 %v586, 0.0
        %v589 = vpack.c.bf16 %v588, %v587
        %v590 = vld [vmem:[%s3] sm:$0xf]
        %v591 = vld [vmem:[%s3 + $0x4] sm:$0xf]
        %592 = vset.pattern.permute.xlu0 5
        %593 = vperm.xlu0 %592, %v286
        %v594 = vpop.permute.xlu0 %593
        %596 = vset.pattern.permute.xlu0 5
        %597 = vperm.xlu0 %596, %v287
        %v598 = vpop.permute.xlu0 %597
        %v602 = vunpack.c.l.b16 %v590
        %v603 = vunpack.c.l.b16 %v591
        %v604 = vpack.c.b16 %v603, %v602
        %v606 = vsel %vm361, %v604, 0
        %608 = vmatprep.subr.bf16.mxu0 0
        %609 = vmatpush1.bf16.msra.mxu0 0
        %610 = vmatprep.subr.bf16.mxu0 0
        %611 = vmatpush1.bf16.msra.mxu0 0
        %612 = vmatprep.subr.bf16.mxu0 0
        %613 = vmatpush1.bf16.msra.mxu0 0
        %614 = vmatprep.subr.bf16.mxu0 0
        %615 = vmatpush1.bf16.msra.mxu0 0
        %616 = vmatprep.subr.bf16.mxu0 0
        %617 = vmatpush1.bf16.msra.mxu0 0
        %618 = vmatprep.subr.bf16.mxu0 0
        %619 = vmatpush1.bf16.msra.mxu0 0
        %620 = vmatprep.subr.bf16.mxu0 0
        %621 = vmatpush1.bf16.msra.mxu0 0
        %622 = vmatprep.subr.bf16.mxu0 0
        %623 = vmatpush1.bf16.msra.mxu0 %v589
        %624 = vmatprep.subr.bf16.mxu0 0
        %625 = vmatpush2.bf16.msra.mxu0 0
        %626 = vmatprep.subr.bf16.mxu0 0
        %627 = vmatpush2.bf16.msra.mxu0 0
        %628 = vmatprep.subr.bf16.mxu0 0
        %629 = vmatpush2.bf16.msra.mxu0 0
        %630 = vmatprep.subr.bf16.mxu0 0
        %631 = vmatpush2.bf16.msra.mxu0 0
        %632 = vmatprep.subr.bf16.mxu0 0
        %633 = vmatpush2.bf16.msra.mxu0 0
        %634 = vmatprep.subr.bf16.mxu0 0
        %635 = vmatpush2.bf16.msra.mxu0 0
        %636 = vmatprep.subr.bf16.mxu0 0
        %637 = vmatpush2.bf16.msra.mxu0 0
        %638 = vmatprep.subr.bf16.mxu0 0
        %639 = vmatpush2.bf16.msra.mxu0 0
        %640 = vmatprep.mubr.bf16.mxu0 0
        %641 = vmatmul.mubr.bf16.gmra.mxu0 %v606
        %v642 = vpop.f32.mrf.mxu0
        %v643 = vadd.f32 %v594, %v642
        %v644 = vpop.f32.mrf.mxu0
        %v645 = vpop.f32.mrf.mxu0
        %v646 = vadd.f32 %v598, %v645
        %v647 = vpop.f32.mrf.mxu0
        %648 = vdwg.mxu0
        %v649 = vadd.f32 %v643, %v291
        %v650 = vadd.f32 %v646, %v292
        %651 = vst [vmem:[%s284] sm:$0xff] %v649
        %652 = vst [vmem:[%s284 + $0x8] sm:$0xff] %v650
        %s653 = sand.u32 %s163, 1
        %s654 = scalar_lea.sflag [#allocation4], %s653
        %s655 = sand.u32 %s163, 1
        %s656 = smul.addr %s655, 16
        %s657 = scalar_lea.vmem [#allocation7], %s656
        // Predicated region
        $region53: #{tpu_custom_call.1} parent=43 // pred_check
          %p658 = pneg %p173
        $region54: #{tpu_custom_call.1} parent=43 // pred_check_branch
          %660 = sbr.rel (%p658) target = $region56
        $region55: #{tpu_custom_call.1} parent=43 // pred_region
          %s662 = ssub.s32 256, 256
          %663 = vsyncadd %s654, %s662
          %s664 = smul.addr %s24, 2
          %s665 = smul.addr %s664, 128
          %s666 = scalar_lea.hbm %s6, %s665
          %s667 = sshll.u32 %s657, 4
          %s668 = int_to_ptr.vmem [resolvable:$true] %s667
          %673 = dma.vmem_to_hbm [thread:$0]  %s668, 256, %s666, %s654, 128, 128, 8
        $region56: #{tpu_custom_call.1} parent=43 // pred_fallthru
          _
      $region44: #{tpu_custom_call.1} parent=5 // pred_fallthru
        _
      %p674 = scmp.le.s32.totalorder 2, %s19
      // Predicated region
      $region57: #{tpu_custom_call.1} parent=5 // pred_check
        %p675 = pneg %p674
      $region58: #{tpu_custom_call.1} parent=5 // pred_check_branch
        %677 = sbr.rel (%p675) target = $region60
      $region59: #{tpu_custom_call.1} parent=5 // pred_region
        %s678 = ssub.s32 %s19, 2
        // Predicated region
        $region61: #{tpu_custom_call.1} parent=59 // pred_check
          %p679 = pneg %p179
        $region62: #{tpu_custom_call.1} parent=59 // pred_check_branch
          %681 = sbr.rel (%p679) target = $region64
        $region63: #{tpu_custom_call.1} parent=59 // pred_region
          %s682 = sand.u32 %s164, 1
          %s683 = scalar_lea.sflag [#allocation4], %s682
          %s684 = sand.u32 %s164, 1
          %s685 = smul.addr %s684, 16
          %s686 = scalar_lea.vmem [#allocation7], %s685
          %687 = dma.done %s683, 256
        $region64: #{tpu_custom_call.1} parent=59 // pred_fallthru
          _
      $region60: #{tpu_custom_call.1} parent=5 // pred_fallthru
        _
    $region6: #{tpu_custom_call.1} parent=1 // loop_footer
      %s23 = sadd.s32 1, %s19
    $region7: #{tpu_custom_call.1} parent=1 // loop_footer_branch
      %18 = sbr.rel target = $region3
    $region8: #{tpu_custom_call.1} parent=1 // loop_exit
      _
    %688 = vsyncpa [#allocation3], 1
    %s689 = scalar_lea.sflag [#allocation3], 1
    %690 = vsyncpa %s689, 1
    %691 = vsyncpa [#allocation6], 1
    %692 = vsyncpa [#allocation4], 1
    %s693 = scalar_lea.sflag [#allocation4], 1
    %694 = vsyncpa %s693, 1

// kernel: tpu_custom_call.1
$region0: #{tpu_custom_call.1}
  #allocation0 [shape = 'u32[]', space=smem, size = 0x4, offset = 0x4, fixed_abs, tag = 'smem constant byte address 0x4 - core index']
  #allocation1 [shape = 'u32[144,128]{1,0:T(1,128)}', space=vmem, size = 0x12000, scoped, tag = 'internal scratch']
  %s0 = inlined_call_operand.hbm [shape: f32[2,16,128], index: 0, kind: input, shape index: {}]
  %s1 = inlined_call_operand.vmem [shape: bf16[16,16], index: 1, kind: input, shape index: {}]
  %s2 = inlined_call_operand.hbm [shape: bf16[128,128], index: 2, kind: input, shape index: {}]
  %s3 = inlined_call_operand.vmem [shape: bf16[16,16], index: 3, kind: input, shape index: {}]
  %s4 = inlined_call_operand.vmem [shape: f32[16,6], index: 4, kind: input, shape index: {}]
  %s5 = inlined_call_operand.vmem [shape: f32[3,128], index: 5, kind: input, shape index: {}]
  %s6 = inlined_call_operand.hbm [shape: f32[2,16,128], index: 6, kind: output, shape index: {}]
  %s7 = sld [smem:[#allocation0]]
  $region65: #{tpu_custom_call.1} parent=0
    _
  %s9 = ssub.s32 1, %s7
  %s10 = scalar_select 0, %s9, %s7
  $region1: #{tpu_custom_call.1} parent=0
    #allocation2 [shape = 'u8[16384]{0}', space=vmem, size = 0x4000, scoped, tag = 'input window, operand 0']
    #allocation3 [shape = 's32[2]{0}', space=sflag, size = 0x8, scoped, tag = 'scoped memory for tpu_custom_call.1']
    #allocation4 [shape = 's32[2]{0}', space=sflag, size = 0x8, scoped, tag = 'scoped memory for tpu_custom_call.1']
    #allocation5 [shape = 'u8[32768]{0}', space=vmem, size = 0x8000, scoped, tag = 'input window, operand 2, single buffered']
    #allocation6 [shape = 's32[1]{0}', space=sflag, size = 0x4, scoped, tag = 'scoped memory for tpu_custom_call.1']
    #allocation7 [shape = 'u8[16384]{0}', space=vmem, size = 0x4000, scoped, tag = 'output window, operand 0']
    %11 = vsyncpa [#allocation3], 0
    %s12 = scalar_lea.sflag [#allocation3], 1
    %13 = vsyncpa %s12, 0
    %14 = vsyncpa [#allocation6], 0
    %15 = vsyncpa [#allocation4], 0
    %s16 = scalar_lea.sflag [#allocation4], 1
    %17 = vsyncpa %s16, 0
    loop: start=0, step=1, limit=4
    $region2: #{tpu_custom_call.1} parent=1 // loop_pre_header
      _
    $region3: #{tpu_custom_call.1} parent=1 // loop_header
      %s19 = sphi 0, %s23
      %p20 = scmp.ge.s32.totalorder %s19, 4
      %s29 = sphi 0, %s31
      %s32 = sphi 0, %s29
      %s33 = sphi 0, %s32
      %s49 = sphi 0, %s33
      %s53 = sphi 0, %s53
      %s55 = sphi 0, %s53
      %s56 = sphi 0, %s55
      %s70 = sphi 0, %s56
      %s74 = sphi 0, %s74
      %s76 = sphi 0, %s74
      %s77 = sphi 0, %s76
      %s91 = sphi 0, %s77
      %s95 = sphi 0, %s95
      %s97 = sphi 0, %s95
      %s98 = sphi 0, %s97
      %s112 = sphi 0, %s98
      %s116 = sphi 0, %s116
      %s118 = sphi 0, %s116
      %s119 = sphi 0, %s118
      %s133 = sphi 0, %s119
      %s137 = sphi 0, %s137
      %s139 = sphi 0, %s137
      %s140 = sphi 0, %s139
      %s154 = sphi 0, %s140
      %s160 = sphi 0, %s162
      %s163 = sphi 0, %s160
      %s164 = sphi 0, %s163
      %s180 = sphi 0, %s164
    $region4: #{tpu_custom_call.1} parent=1 // loop_header_branch
      %22 = sbr.rel (%p20) target = $region8
    $region5: #{tpu_custom_call.1} parent=1 // loop_body
      %s24 = ssub.s32 %s19, 1
      %s25 = ssub.s32 %s19, 2
      %s26 = sadd.s32 %s19, 1
      %s27 = ssub.s32 %s19, %s26
      %p28 = scmp.eq.s32.totalorder %s27, 0
      %s30 = sadd.s32 %s29, 1
      %s31 = scalar_select %p28, %s29, %s30
      %p34 = pneg %p28
      %p35 = scmp.eq.s32.totalorder %s19, 1
      %p36 = por %p34, %p35
      %p37 = scmp.ne.s32.totalorder %s29, %s32
      %p38 = scmp.eq.s32.totalorder %s19, 0
      %p39 = por %p37, %p38
      %p40 = scmp.ne.s32.totalorder %s29, %s32
      %p41 = scmp.eq.s32.totalorder %s24, 1
      %p42 = por %p40, %p41
      %p43 = scmp.ne.s32.totalorder %s32, %s33
      %p44 = scmp.eq.s32.totalorder %s24, 0
      %p45 = por %p43, %p44
      %p46 = scmp.ne.s32.totalorder %s32, %s33
      %p47 = scmp.eq.s32.totalorder %s25, 1
      %p48 = por %p46, %p47
      %p50 = scmp.ne.s32.totalorder %s33, %s49
      %p51 = scmp.eq.s32.totalorder %s25, 0
      %p52 = por %p50, %p51
      %s54 = sadd.s32 %s53, 1
      %p57 = scmp.eq.s32.totalorder %s19, 1
      %p58 = scmp.ne.s32.totalorder %s53, %s55
      %p59 = scmp.eq.s32.totalorder %s19, 0
      %p60 = por %p58, %p59
      %p61 = scmp.ne.s32.totalorder %s53, %s55
      %p62 = scmp.eq.s32.totalorder %s24, 1
      %p63 = por %p61, %p62
      %p64 = scmp.ne.s32.totalorder %s55, %s56
      %p65 = scmp.eq.s32.totalorder %s24, 0
      %p66 = por %p64, %p65
      %p67 = scmp.ne.s32.totalorder %s55, %s56
      %p68 = scmp.eq.s32.totalorder %s25, 1
      %p69 = por %p67, %p68
      %p71 = scmp.ne.s32.totalorder %s56, %s70
      %p72 = scmp.eq.s32.totalorder %s25, 0
      %p73 = por %p71, %p72
      %s75 = sadd.s32 %s74, 1
      %p78 = scmp.eq.s32.totalorder %s19, 1
      %p79 = scmp.ne.s32.totalorder %s74, %s76
      %p80 = scmp.eq.s32.totalorder %s19, 0
      %p81 = por %p79, %p80
      %p82 = scmp.ne.s32.totalorder %s74, %s76
      %p83 = scmp.eq.s32.totalorder %s24, 1
      %p84 = por %p82, %p83
      %p85 = scmp.ne.s32.totalorder %s76, %s77
      %p86 = scmp.eq.s32.totalorder %s24, 0
      %p87 = por %p85, %p86
      %p88 = scmp.ne.s32.totalorder %s76, %s77
      %p89 = scmp.eq.s32.totalorder %s25, 1
      %p90 = por %p88, %p89
      %p92 = scmp.ne.s32.totalorder %s77, %s91
      %p93 = scmp.eq.s32.totalorder %s25, 0
      %p94 = por %p92, %p93
      %s96 = sadd.s32 %s95, 1
      %p99 = scmp.eq.s32.totalorder %s19, 1
      %p100 = scmp.ne.s32.totalorder %s95, %s97
      %p101 = scmp.eq.s32.totalorder %s19, 0
      %p102 = por %p100, %p101
      %p103 = scmp.ne.s32.totalorder %s95, %s97
      %p104 = scmp.eq.s32.totalorder %s24, 1
      %p105 = por %p103, %p104
      %p106 = scmp.ne.s32.totalorder %s97, %s98
      %p107 = scmp.eq.s32.totalorder %s24, 0
      %p108 = por %p106, %p107
      %p109 = scmp.ne.s32.totalorder %s97, %s98
      %p110 = scmp.eq.s32.totalorder %s25, 1
      %p111 = por %p109, %p110
      %p113 = scmp.ne.s32.totalorder %s98, %s112
      %p114 = scmp.eq.s32.totalorder %s25, 0
      %p115 = por %p113, %p114
      %s117 = sadd.s32 %s116, 1
      %p120 = scmp.eq.s32.totalorder %s19, 1
      %p121 = scmp.ne.s32.totalorder %s116, %s118
      %p122 = scmp.eq.s32.totalorder %s19, 0
      %p123 = por %p121, %p122
      %p124 = scmp.ne.s32.totalorder %s116, %s118
      %p125 = scmp.eq.s32.totalorder %s24, 1
      %p126 = por %p124, %p125
      %p127 = scmp.ne.s32.totalorder %s118, %s119
      %p128 = scmp.eq.s32.totalorder %s24, 0
      %p129 = por %p127, %p128
      %p130 = scmp.ne.s32.totalorder %s118, %s119
      %p131 = scmp.eq.s32.totalorder %s25, 1
      %p132 = por %p130, %p131
      %p134 = scmp.ne.s32.totalorder %s119, %s133
      %p135 = scmp.eq.s32.totalorder %s25, 0
      %p136 = por %p134, %p135
      %s138 = sadd.s32 %s137, 1
      %p141 = scmp.eq.s32.totalorder %s19, 1
      %p142 = scmp.ne.s32.totalorder %s137, %s139
      %p143 = scmp.eq.s32.totalorder %s19, 0
      %p144 = por %p142, %p143
      %p145 = scmp.ne.s32.totalorder %s137, %s139
      %p146 = scmp.eq.s32.totalorder %s24, 1
      %p147 = por %p145, %p146
      %p148 = scmp.ne.s32.totalorder %s139, %s140
      %p149 = scmp.eq.s32.totalorder %s24, 0
      %p150 = por %p148, %p149
      %p151 = scmp.ne.s32.totalorder %s139, %s140
      %p152 = scmp.eq.s32.totalorder %s25, 1
      %p153 = por %p151, %p152
      %p155 = scmp.ne.s32.totalorder %s140, %s154
      %p156 = scmp.eq.s32.totalorder %s25, 0
      %p157 = por %p155, %p156
      %s158 = ssub.s32 %s19, %s26
      %p159 = scmp.eq.s32.totalorder %s158, 0
      %s161 = sadd.s32 %s160, 1
      %s162 = scalar_select %p159, %s160, %s161
      %p165 = pneg %p159
      %p166 = scmp.eq.s32.totalorder %s19, 1
      %p167 = por %p165, %p166
      %p168 = scmp.ne.s32.totalorder %s160, %s163
      %p169 = scmp.eq.s32.totalorder %s19, 0
      %p170 = por %p168, %p169
      %p171 = scmp.ne.s32.totalorder %s160, %s163
      %p172 = scmp.eq.s32.totalorder %s24, 1
      %p173 = por %p171, %p172
      %p174 = scmp.ne.s32.totalorder %s163, %s164
      %p175 = scmp.eq.s32.totalorder %s24, 0
      %p176 = por %p174, %p175
      %p177 = scmp.ne.s32.totalorder %s163, %s164
      %p178 = scmp.eq.s32.totalorder %s25, 1
      %p179 = por %p177, %p178
      %p181 = scmp.ne.s32.totalorder %s164, %s180
      %p182 = scmp.eq.s32.totalorder %s25, 0
      %p183 = por %p181, %p182
      %p184 = scmp.le.s32.totalorder 1, %s19
      %p185 = scmp.lt.s32.totalorder %s19, 3
      %p186 = pnand %p184, %p185
      %p187 = pneg %p186
      // Predicated region
      $region9: #{tpu_custom_call.1} parent=5 // pred_check
        _
      $region10: #{tpu_custom_call.1} parent=5 // pred_check_branch
        %189 = sbr.rel (%p186) target = $region12
      $region11: #{tpu_custom_call.1} parent=5 // pred_region
        %s190 = ssub.s32 %s19, 1
        // Predicated region
        $region13: #{tpu_custom_call.1} parent=11 // pred_check
          %p191 = pneg %p66
        $region14: #{tpu_custom_call.1} parent=11 // pred_check_branch
          %193 = sbr.rel (%p191) target = $region16
        $region15: #{tpu_custom_call.1} parent=11 // pred_region
          _
        $region16: #{tpu_custom_call.1} parent=11 // pred_fallthru
          _
        // Predicated region
        $region17: #{tpu_custom_call.1} parent=11 // pred_check
          %p194 = pneg %p87
        $region18: #{tpu_custom_call.1} parent=11 // pred_check_branch
          %196 = sbr.rel (%p194) target = $region20
        $region19: #{tpu_custom_call.1} parent=11 // pred_region
          %s198 = ssub.s32 1024, 1024
          %199 = vsyncadd [#allocation6], %s198
          %s200 = sshll.u32 [#allocation5], 4
          %s201 = int_to_ptr.vmem [resolvable:$true] %s200
          %206 = dma.hbm_to_vmem [thread:$0]  %s2, 1024, %s201, [#allocation6], 64, 64, 4
        $region20: #{tpu_custom_call.1} parent=11 // pred_fallthru
          _
        // Predicated region
        $region21: #{tpu_custom_call.1} parent=11 // pred_check
          %p207 = pneg %p108
        $region22: #{tpu_custom_call.1} parent=11 // pred_check_branch
          %209 = sbr.rel (%p207) target = $region24
        $region23: #{tpu_custom_call.1} parent=11 // pred_region
          _
        $region24: #{tpu_custom_call.1} parent=11 // pred_fallthru
          _
        // Predicated region
        $region25: #{tpu_custom_call.1} parent=11 // pred_check
          %p210 = pneg %p129
        $region26: #{tpu_custom_call.1} parent=11 // pred_check_branch
          %212 = sbr.rel (%p210) target = $region28
        $region27: #{tpu_custom_call.1} parent=11 // pred_region
          _
        $region28: #{tpu_custom_call.1} parent=11 // pred_fallthru
          _
        // Predicated region
        $region29: #{tpu_custom_call.1} parent=11 // pred_check
          %p213 = pneg %p150
        $region30: #{tpu_custom_call.1} parent=11 // pred_check_branch
          %215 = sbr.rel (%p213) target = $region32
        $region31: #{tpu_custom_call.1} parent=11 // pred_region
          _
        $region32: #{tpu_custom_call.1} parent=11 // pred_fallthru
          _
      $region12: #{tpu_custom_call.1} parent=5 // pred_fallthru
        _
      %p216 = scmp.lt.s32.totalorder %s19, 2
      // Predicated region
      $region33: #{tpu_custom_call.1} parent=5 // pred_check
        %p217 = pneg %p216
      $region34: #{tpu_custom_call.1} parent=5 // pred_check_branch
        %219 = sbr.rel (%p217) target = $region36
      $region35: #{tpu_custom_call.1} parent=5 // pred_region
        // Predicated region
        $region37: #{tpu_custom_call.1} parent=35 // pred_check
          %p220 = pneg %p39
        $region38: #{tpu_custom_call.1} parent=35 // pred_check_branch
          %222 = sbr.rel (%p220) target = $region40
        $region39: #{tpu_custom_call.1} parent=35 // pred_region
          %s223 = sand.u32 %s29, 1
          %s224 = scalar_lea.sflag [#allocation3], %s223
          %s225 = sand.u32 %s29, 1
          %s226 = smul.addr %s225, 16
          %s227 = scalar_lea.vmem [#allocation2], %s226
          %s229 = ssub.s32 256, 256
          %230 = vsyncadd %s224, %s229
          %s231 = smul.addr %s19, 2
          %s232 = smul.addr %s231, 128
          %s233 = scalar_lea.hbm %s0, %s232
          %s234 = sshll.u32 %s227, 4
          %s235 = int_to_ptr.vmem [resolvable:$true] %s234
          %240 = dma.hbm_to_vmem [thread:$0]  %s233, 256, %s235, %s224, 128, 128, 8
        $region40: #{tpu_custom_call.1} parent=35 // pred_fallthru
          _
      $region36: #{tpu_custom_call.1} parent=5 // pred_fallthru
        _
      %p241 = scmp.le.s32.totalorder 1, %s19
      %p242 = scmp.lt.s32.totalorder %s19, 3
      %p243 = pnand %p241, %p242
      %p244 = pneg %p243
      // Predicated region
      $region41: #{tpu_custom_call.1} parent=5 // pred_check
        _
      $region42: #{tpu_custom_call.1} parent=5 // pred_check_branch
        %246 = sbr.rel (%p243) target = $region44
      $region43: #{tpu_custom_call.1} parent=5 // pred_region
        %s247 = ssub.s32 %s19, 1
        %s248 = sand.u32 %s32, 1
        %s249 = scalar_lea.sflag [#allocation3], %s248
        %s250 = sand.u32 %s32, 1
        %s251 = smul.addr %s250, 16
        %s252 = scalar_lea.vmem [#allocation2], %s251
        // Predicated region
        $region45: #{tpu_custom_call.1} parent=43 // pred_check
          %p253 = pneg %p45
        $region46: #{tpu_custom_call.1} parent=43 // pred_check_branch
          %255 = sbr.rel (%p253) target = $region48
        $region47: #{tpu_custom_call.1} parent=43 // pred_region
          %256 = dma.done %s249, 256
        $region48: #{tpu_custom_call.1} parent=43 // pred_fallthru
          _
        // Predicated region
        $region49: #{tpu_custom_call.1} parent=43 // pred_check
          %p257 = pneg %p87
        $region50: #{tpu_custom_call.1} parent=43 // pred_check_branch
          %259 = sbr.rel (%p257) target = $region52
        $region51: #{tpu_custom_call.1} parent=43 // pred_region
          %260 = dma.done [#allocation6], 1024
        $region52: #{tpu_custom_call.1} parent=43 // pred_fallthru
          _
        %s261 = sand.u32 %s32, 1
        %s262 = scalar_lea.sflag [#allocation3], %s261
        %s263 = sand.u32 %s32, 1
        %s264 = smul.addr %s263, 16
        %s265 = scalar_lea.vmem [#allocation2], %s264
        %p266 = pneg %p45
        %p267 = pneg %p42
        %p268 = pneg %p66
        %p269 = pneg %p63
        %p270 = pneg %p87
        %p271 = pneg %p84
        %p272 = pneg %p108
        %p273 = pneg %p105
        %p274 = pneg %p129
        %p275 = pneg %p126
        %p276 = pneg %p150
        %p277 = pneg %p147
        %p278 = pneg %p176
        %p279 = pneg %p173
        %s280 = sand.u32 %s163, 1
        %s281 = scalar_lea.sflag [#allocation4], %s280
        %s282 = sand.u32 %s163, 1
        %s283 = smul.addr %s282, 16
        %s284 = scalar_lea.vmem [#allocation7], %s283
        %v286 = vld [vmem:[%s4] sm:$0xff]
        %v287 = vld [vmem:[%s4 + $0x8] sm:$0xff]
        %v288 = vld [vmem:[%s5] sm:$0x1]
        %v289 = vld [vmem:[%s5 + $0x1] sm:$0x1]
        %v290 = vld [vmem:[%s5 + $0x2] sm:$0x1]
        %v291 = vld [vmem:[%s252] sm:$0xff]
        %v292 = vld [vmem:[%s252 + $0x8] sm:$0xff]
        %293 = vadd.xlane.f32.xlu0 %v291
        %v294 = vpop.xlane.xlu0 %293
        %295 = vadd.xlane.f32.xlu0 %v292
        %v296 = vpop.xlane.xlu0 %295
        %v297 = vmul.f32 %v294, 0.0625
        %v298 = vmul.f32 %v296, 0.0625
        %v299 = vmul.f32 %v291, %v291
        %v300 = vmul.f32 %v292, %v292
        %301 = vadd.xlane.f32.xlu0 %v299
        %v302 = vpop.xlane.xlu0 %301
        %303 = vadd.xlane.f32.xlu0 %v300
        %v304 = vpop.xlane.xlu0 %303
        %v305 = vmul.f32 %v302, 0.0625
        %v306 = vmul.f32 %v304, 0.0625
        %v307 = vmul.f32 %v297, %v297
        %v308 = vmul.f32 %v298, %v298
        %v309 = vsub.f32 %v305, %v307
        %v310 = vsub.f32 %v306, %v308
        %v311 = vmax.f32 %v309, 0.0
        %v312 = vmax.f32 %v310, 0.0
        %v313 = vsub.f32 %v291, %v297
        %v314 = vsub.f32 %v292, %v298
        %v315 = vadd.f32 %v311, 0.001
        %v316 = vadd.f32 %v312, 0.001
        %v317 = vrsqrt.pop %v315
        %v318 = vrsqrt.pop %v316
        %v319 = vmul.f32 %v313, %v317
        %v320 = vmul.f32 %v314, %v318
        %322 = vset.pattern.permute.xlu0 1
        %323 = vperm.xlu0 %322, %v286
        %v324 = vpop.permute.xlu0 %323
        %327 = vset.pattern.permute.xlu0 1
        %328 = vperm.xlu0 %327, %v287
        %v329 = vpop.permute.xlu0 %328
        %v331 = vmul.f32 %v319, %v324
        %v332 = vmul.f32 %v320, %v329
        %333 = vset.pattern.permute.xlu0 2
        %334 = vperm.xlu0 %333, %v286
        %v335 = vpop.permute.xlu0 %334
        %337 = vset.pattern.permute.xlu0 2
        %338 = vperm.xlu0 %337, %v287
        %v339 = vpop.permute.xlu0 %338
        %v341 = vadd.f32 %v331, %v335
        %v342 = vadd.f32 %v332, %v339
        %v343 = vmax.f32 %v341, 0.0
        %v344 = vmax.f32 %v342, 0.0
        %v345 = vpack.c.bf16 %v344, %v343
        %v346 = vld [vmem:[%s1] sm:$0xf]
        %v347 = vld [vmem:[%s1 + $0x4] sm:$0xf]
        %348 = vset.pattern.permute.xlu0 0
        %349 = vperm.xlu0 %348, %v286
        %v350 = vpop.permute.xlu0 %349
        %352 = vset.pattern.permute.xlu0 0
        %353 = vperm.xlu0 %352, %v287
        %v354 = vpop.permute.xlu0 %353
        %v358 = vunpack.c.l.b16 %v346
        %v359 = vunpack.c.l.b16 %v347
        %v360 = vpack.c.b16 %v359, %v358
        %vm361 = vcmask 130048
        %v363 = vsel %vm361, %v360, 0
        %365 = vmatprep.subr.bf16.mxu0 0
        %366 = vmatpush1.bf16.msra.mxu0 0
        %367 = vmatprep.subr.bf16.mxu0 0
        %368 = vmatpush1.bf16.msra.mxu0 0
        %369 = vmatprep.subr.bf16.mxu0 0
        %370 = vmatpush1.bf16.msra.mxu0 0
        %371 = vmatprep.subr.bf16.mxu0 0
        %372 = vmatpush1.bf16.msra.mxu0 0
        %373 = vmatprep.subr.bf16.mxu0 0
        %374 = vmatpush1.bf16.msra.mxu0 0
        %375 = vmatprep.subr.bf16.mxu0 0
        %376 = vmatpush1.bf16.msra.mxu0 0
        %377 = vmatprep.subr.bf16.mxu0 0
        %378 = vmatpush1.bf16.msra.mxu0 0
        %379 = vmatprep.subr.bf16.mxu0 0
        %380 = vmatpush1.bf16.msra.mxu0 %v345
        %381 = vmatprep.subr.bf16.mxu0 0
        %382 = vmatpush2.bf16.msra.mxu0 0
        %383 = vmatprep.subr.bf16.mxu0 0
        %384 = vmatpush2.bf16.msra.mxu0 0
        %385 = vmatprep.subr.bf16.mxu0 0
        %386 = vmatpush2.bf16.msra.mxu0 0
        %387 = vmatprep.subr.bf16.mxu0 0
        %388 = vmatpush2.bf16.msra.mxu0 0
        %389 = vmatprep.subr.bf16.mxu0 0
        %390 = vmatpush2.bf16.msra.mxu0 0
        %391 = vmatprep.subr.bf16.mxu0 0
        %392 = vmatpush2.bf16.msra.mxu0 0
        %393 = vmatprep.subr.bf16.mxu0 0
        %394 = vmatpush2.bf16.msra.mxu0 0
        %395 = vmatprep.subr.bf16.mxu0 0
        %396 = vmatpush2.bf16.msra.mxu0 0
        %397 = vmatprep.mubr.bf16.mxu0 0
        %398 = vmatmul.mubr.bf16.gmra.mxu0 %v363
        %v399 = vpop.f32.mrf.mxu0
        %v400 = vadd.f32 %v350, %v399
        %v401 = vpop.f32.mrf.mxu0
        %v402 = vpop.f32.mrf.mxu0
        %v403 = vadd.f32 %v354, %v402
        %v404 = vpop.f32.mrf.mxu0
        %405 = vdwg.mxu0
        %v406 = vlaneseq
        %v407 = vand.u32 %v406, 127
        %vm408 = vcmp.lt.s32.totalorder %v407, 16
        %v409 = vsel %vm408, 1, 0
        %vm410 = vcmp.eq.s32.totalorder %v409, 1
        %v411 = vsel %vm410, %v400, 0.0
        %v412 = vsel %vm410, %v403, 0.0
        %v413 = vlaneseq
        %v414 = vshrl.u32 %v413, 7
        %v415 = vsub.s32 0, %v414
        %v416 = vrot.slane %v288, %v415
        %v417 = vmul.f32 %v411, %v416
        %v418 = vmul.f32 %v412, %v416
        %v419 = vlaneseq
        %v420 = vshrl.u32 %v419, 7
        %v421 = vsub.s32 0, %v420
        %v422 = vrot.slane %v289, %v421
        %v423 = vadd.f32 %v417, %v422
        %v424 = vadd.f32 %v418, %v422
        %v425 = vmax.f32 %v423, 0.0
        %v426 = vmax.f32 %v424, 0.0
        %v427 = vpack.c.bf16 %v426, %v425
        %v428 = vld [vmem:[#allocation5] sm:$0xf]
        %v429 = vld [vmem:[#allocation5 + $0x4] sm:$0xf]
        %v430 = vld [vmem:[#allocation5 + $0x8] sm:$0xf]
        %v431 = vld [vmem:[#allocation5 + $0xc] sm:$0xf]
        %v432 = vld [vmem:[#allocation5 + $0x10] sm:$0xf]
        %v433 = vld [vmem:[#allocation5 + $0x14] sm:$0xf]
        %v434 = vld [vmem:[#allocation5 + $0x18] sm:$0xf]
        %v435 = vld [vmem:[#allocation5 + $0x1c] sm:$0xf]
        %v436 = vld [vmem:[#allocation5 + $0x20] sm:$0xf]
        %v437 = vld [vmem:[#allocation5 + $0x24] sm:$0xf]
        %v438 = vld [vmem:[#allocation5 + $0x28] sm:$0xf]
        %v439 = vld [vmem:[#allocation5 + $0x2c] sm:$0xf]
        %v440 = vld [vmem:[#allocation5 + $0x30] sm:$0xf]
        %v441 = vld [vmem:[#allocation5 + $0x34] sm:$0xf]
        %v442 = vld [vmem:[#allocation5 + $0x38] sm:$0xf]
        %v443 = vld [vmem:[#allocation5 + $0x3c] sm:$0xf]
        %v444 = vlaneseq
        %v445 = vshrl.u32 %v444, 7
        %v446 = vsub.s32 0, %v445
        %v447 = vrot.slane %v290, %v446
        %v464 = vunpack.c.l.b16 %v428
        %v465 = vunpack.c.l.b16 %v429
        %v466 = vunpack.c.l.b16 %v430
        %v467 = vunpack.c.l.b16 %v431
        %v468 = vunpack.c.l.b16 %v432
        %v469 = vunpack.c.l.b16 %v433
        %v470 = vunpack.c.l.b16 %v434
        %v471 = vunpack.c.l.b16 %v435
        %v472 = vunpack.c.l.b16 %v436
        %v473 = vunpack.c.l.b16 %v437
        %v474 = vunpack.c.l.b16 %v438
        %v475 = vunpack.c.l.b16 %v439
        %v476 = vunpack.c.l.b16 %v440
        %v477 = vunpack.c.l.b16 %v441
        %v478 = vunpack.c.l.b16 %v442
        %v479 = vunpack.c.l.b16 %v443
        %v480 = vpack.c.b16 %v465, %v464
        %v481 = vpack.c.b16 %v467, %v466
        %v482 = vpack.c.b16 %v469, %v468
        %v483 = vpack.c.b16 %v471, %v470
        %v484 = vpack.c.b16 %v473, %v472
        %v485 = vpack.c.b16 %v475, %v474
        %v486 = vpack.c.b16 %v477, %v476
        %v487 = vpack.c.b16 %v479, %v478
        %496 = vmatprep.subr.bf16.mxu0 0
        %497 = vmatpush1.bf16.msra.mxu0 %v487
        %498 = vmatprep.subr.bf16.mxu0 0
        %499 = vmatpush1.bf16.msra.mxu0 %v486
        %500 = vmatprep.subr.bf16.mxu0 0
        %501 = vmatpush1.bf16.msra.mxu0 %v485
        %502 = vmatprep.subr.bf16.mxu0 0
        %503 = vmatpush1.bf16.msra.mxu0 %v484
        %504 = vmatprep.subr.bf16.mxu0 0
        %505 = vmatpush1.bf16.msra.mxu0 %v483
        %506 = vmatprep.subr.bf16.mxu0 0
        %507 = vmatpush1.bf16.msra.mxu0 %v482
        %508 = vmatprep.subr.bf16.mxu0 0
        %509 = vmatpush1.bf16.msra.mxu0 %v481
        %510 = vmatprep.subr.bf16.mxu0 0
        %511 = vmatpush1.bf16.msra.mxu0 %v480
        %512 = vmatprep.subr.bf16.mxu0 0
        %513 = vmatpush2.bf16.msra.mxu0 0
        %514 = vmatprep.subr.bf16.mxu0 0
        %515 = vmatpush2.bf16.msra.mxu0 0
        %516 = vmatprep.subr.bf16.mxu0 0
        %517 = vmatpush2.bf16.msra.mxu0 0
        %518 = vmatprep.subr.bf16.mxu0 0
        %519 = vmatpush2.bf16.msra.mxu0 0
        %520 = vmatprep.subr.bf16.mxu0 0
        %521 = vmatpush2.bf16.msra.mxu0 0
        %522 = vmatprep.subr.bf16.mxu0 0
        %523 = vmatpush2.bf16.msra.mxu0 0
        %524 = vmatprep.subr.bf16.mxu0 0
        %525 = vmatpush2.bf16.msra.mxu0 0
        %526 = vmatprep.subr.bf16.mxu0 0
        %527 = vmatpush2.bf16.msra.mxu0 0
        %528 = vmatprep.mubr.bf16.mxu0 0
        %529 = vmatmul.mubr.bf16.gmra.mxu0 %v427
        %v530 = vpop.f32.mrf.mxu0
        %v531 = vadd.f32 %v447, %v530
        %v532 = vpop.f32.mrf.mxu0
        %v533 = vpop.f32.mrf.mxu0
        %v534 = vadd.f32 %v447, %v533
        %v535 = vpop.f32.mrf.mxu0
        %536 = vdwg.mxu0
        %v537 = vadd.f32 %v411, %v531
        %v538 = vadd.f32 %v412, %v534
        %539 = vadd.xlane.f32.xlu0 %v537
        %v540 = vpop.xlane.xlu0 %539
        %541 = vadd.xlane.f32.xlu0 %v538
        %v542 = vpop.xlane.xlu0 %541
        %v543 = vmul.f32 %v540, 0.0625
        %v544 = vmul.f32 %v542, 0.0625
        %v545 = vmul.f32 %v537, %v537
        %v546 = vmul.f32 %v538, %v538
        %547 = vadd.xlane.f32.xlu0 %v545
        %v548 = vpop.xlane.xlu0 %547
        %549 = vadd.xlane.f32.xlu0 %v546
        %v550 = vpop.xlane.xlu0 %549
        %v551 = vmul.f32 %v548, 0.0625
        %v552 = vmul.f32 %v550, 0.0625
        %v553 = vmul.f32 %v543, %v543
        %v554 = vmul.f32 %v544, %v544
        %v555 = vsub.f32 %v551, %v553
        %v556 = vsub.f32 %v552, %v554
        %v557 = vmax.f32 %v555, 0.0
        %v558 = vmax.f32 %v556, 0.0
        %v559 = vsub.f32 %v537, %v543
        %v560 = vsub.f32 %v538, %v544
        %v561 = vadd.f32 %v557, 0.001
        %v562 = vadd.f32 %v558, 0.001
        %v563 = vrsqrt.pop %v561
        %v564 = vrsqrt.pop %v562
        %v565 = vmul.f32 %v559, %v563
        %v566 = vmul.f32 %v560, %v564
        %567 = vset.pattern.permute.xlu0 3
        %568 = vperm.xlu0 %567, %v286
        %v569 = vpop.permute.xlu0 %568
        %571 = vset.pattern.permute.xlu0 3
        %572 = vperm.xlu0 %571, %v287
        %v573 = vpop.permute.xlu0 %572
        %v575 = vmul.f32 %v565, %v569
        %v576 = vmul.f32 %v566, %v573
        %577 = vset.pattern.permute.xlu0 4
        %578 = vperm.xlu0 %577, %v286
        %v579 = vpop.permute.xlu0 %578
        %581 = vset.pattern.permute.xlu0 4
        %582 = vperm.xlu0 %581, %v287
        %v583 = vpop.permute.xlu0 %582
        %v585 = vadd.f32 %v575, %v579
        %v586 = vadd.f32 %v576, %v583
        %v587 = vmax.f32 %v585, 0.0
        %v588 = vmax.f32 %v586, 0.0
        %v589 = vpack.c.bf16 %v588, %v587
        %v590 = vld [vmem:[%s3] sm:$0xf]
        %v591 = vld [vmem:[%s3 + $0x4] sm:$0xf]
        %592 = vset.pattern.permute.xlu0 5
        %593 = vperm.xlu0 %592, %v286
        %v594 = vpop.permute.xlu0 %593
        %596 = vset.pattern.permute.xlu0 5
        %597 = vperm.xlu0 %596, %v287
        %v598 = vpop.permute.xlu0 %597
        %v602 = vunpack.c.l.b16 %v590
        %v603 = vunpack.c.l.b16 %v591
        %v604 = vpack.c.b16 %v603, %v602
        %v606 = vsel %vm361, %v604, 0
        %608 = vmatprep.subr.bf16.mxu0 0
        %609 = vmatpush1.bf16.msra.mxu0 0
        %610 = vmatprep.subr.bf16.mxu0 0
        %611 = vmatpush1.bf16.msra.mxu0 0
        %612 = vmatprep.subr.bf16.mxu0 0
        %613 = vmatpush1.bf16.msra.mxu0 0
        %614 = vmatprep.subr.bf16.mxu0 0
        %615 = vmatpush1.bf16.msra.mxu0 0
        %616 = vmatprep.subr.bf16.mxu0 0
        %617 = vmatpush1.bf16.msra.mxu0 0
        %618 = vmatprep.subr.bf16.mxu0 0
        %619 = vmatpush1.bf16.msra.mxu0 0
        %620 = vmatprep.subr.bf16.mxu0 0
        %621 = vmatpush1.bf16.msra.mxu0 0
        %622 = vmatprep.subr.bf16.mxu0 0
        %623 = vmatpush1.bf16.msra.mxu0 %v589
        %624 = vmatprep.subr.bf16.mxu0 0
        %625 = vmatpush2.bf16.msra.mxu0 0
        %626 = vmatprep.subr.bf16.mxu0 0
        %627 = vmatpush2.bf16.msra.mxu0 0
        %628 = vmatprep.subr.bf16.mxu0 0
        %629 = vmatpush2.bf16.msra.mxu0 0
        %630 = vmatprep.subr.bf16.mxu0 0
        %631 = vmatpush2.bf16.msra.mxu0 0
        %632 = vmatprep.subr.bf16.mxu0 0
        %633 = vmatpush2.bf16.msra.mxu0 0
        %634 = vmatprep.subr.bf16.mxu0 0
        %635 = vmatpush2.bf16.msra.mxu0 0
        %636 = vmatprep.subr.bf16.mxu0 0
        %637 = vmatpush2.bf16.msra.mxu0 0
        %638 = vmatprep.subr.bf16.mxu0 0
        %639 = vmatpush2.bf16.msra.mxu0 0
        %640 = vmatprep.mubr.bf16.mxu0 0
        %641 = vmatmul.mubr.bf16.gmra.mxu0 %v606
        %v642 = vpop.f32.mrf.mxu0
        %v643 = vadd.f32 %v594, %v642
        %v644 = vpop.f32.mrf.mxu0
        %v645 = vpop.f32.mrf.mxu0
        %v646 = vadd.f32 %v598, %v645
        %v647 = vpop.f32.mrf.mxu0
        %648 = vdwg.mxu0
        %v649 = vadd.f32 %v643, %v291
        %v650 = vadd.f32 %v646, %v292
        %651 = vst [vmem:[%s284] sm:$0xff] %v649
        %652 = vst [vmem:[%s284 + $0x8] sm:$0xff] %v650
        %s653 = sand.u32 %s163, 1
        %s654 = scalar_lea.sflag [#allocation4], %s653
        %s655 = sand.u32 %s163, 1
        %s656 = smul.addr %s655, 16
        %s657 = scalar_lea.vmem [#allocation7], %s656
        // Predicated region
        $region53: #{tpu_custom_call.1} parent=43 // pred_check
          %p658 = pneg %p173
        $region54: #{tpu_custom_call.1} parent=43 // pred_check_branch
          %660 = sbr.rel (%p658) target = $region56
        $region55: #{tpu_custom_call.1} parent=43 // pred_region
          %s662 = ssub.s32 256, 256
          %663 = vsyncadd %s654, %s662
          %s664 = smul.addr %s24, 2
          %s665 = smul.addr %s664, 128
          %s666 = scalar_lea.hbm %s6, %s665
          %s667 = sshll.u32 %s657, 4
          %s668 = int_to_ptr.vmem [resolvable:$true] %s667
          %673 = dma.vmem_to_hbm [thread:$0]  %s668, 256, %s666, %s654, 128, 128, 8
        $region56: #{tpu_custom_call.1} parent=43 // pred_fallthru
          _
      $region44: #{tpu_custom_call.1} parent=5 // pred_fallthru
        _
      %p674 = scmp.le.s32.totalorder 2, %s19
      // Predicated region
      $region57: #{tpu_custom_call.1} parent=5 // pred_check
        %p675 = pneg %p674
      $region58: #{tpu_custom_call.1} parent=5 // pred_check_branch
        %677 = sbr.rel (%p675) target = $region60
      $region59: #{tpu_custom_call.1} parent=5 // pred_region
        %s678 = ssub.s32 %s19, 2
        // Predicated region
        $region61: #{tpu_custom_call.1} parent=59 // pred_check
          %p679 = pneg %p179
        $region62: #{tpu_custom_call.1} parent=59 // pred_check_branch
          %681 = sbr.rel (%p679) target = $region64
        $region63: #{tpu_custom_call.1} parent=59 // pred_region
          %s682 = sand.u32 %s164, 1
          %s683 = scalar_lea.sflag [#allocation4], %s682
          %s684 = sand.u32 %s164, 1
          %s685 = smul.addr %s684, 16
          %s686 = scalar_lea.vmem [#allocation7], %s685
          %687 = dma.done %s683, 256
        $region64: #{tpu_custom_call.1} parent=59 // pred_fallthru
          _
      $region60: #{tpu_custom_call.1} parent=5 // pred_fallthru
        _
    $region6: #{tpu_custom_call.1} parent=1 // loop_footer
      %s23 = sadd.s32 1, %s19
    $region7: #{tpu_custom_call.1} parent=1 // loop_footer_branch
      %18 = sbr.rel target = $region3
    $region8: #{tpu_custom_call.1} parent=1 // loop_exit
      _
    %688 = vsyncpa [#allocation3], 1
    %s689 = scalar_lea.sflag [#allocation3], 1
    %690 = vsyncpa %s689, 1
    %691 = vsyncpa [#allocation6], 1
    %692 = vsyncpa [#allocation4], 1
    %s693 = scalar_lea.sflag [#allocation4], 1
    %694 = vsyncpa %s693, 1

</llo_original>
